<compile_context>
chip_gen: v5e
topology: v5e:2x2
jax: 0.10.0
libtpu: 0.0.40
codegen_flags: <defaults>
</compile_context>

<pallas_src>
import math
from functools import partial

import jax
import jax.numpy as jnp
from jax.experimental import pallas as pl
from jax.experimental.pallas import tpu as pltpu


# ----------------------------------------------------------------------------
# AudioProjmodel: Linear -> GELU -> Linear -> LayerNorm, K-tiled fused kernel
# ----------------------------------------------------------------------------
def _audio_proj_kernel(x_ref, w1_ref, b1_ref, w2_ref, b2_ref, g_ref, beta_ref,
                       o_ref, acc_ref):
    k = pl.program_id(0)
    nk = pl.num_programs(0)

    @pl.when(k == 0)
    def _():
        acc_ref[...] = jnp.zeros_like(acc_ref)

    # Slice of the first matmul over a hidden-dim block: (N, Dclip)@(Dclip, tk).
    # bf16 operands on the MXU, f32 accumulation.
    h = jnp.dot(x_ref[...], w1_ref[...], preferred_element_type=jnp.float32)
    h = h + b1_ref[...].astype(jnp.float32)
    # Exact (erf-based) GELU == torch.nn.GELU() default, computed in f32.
    h = 0.5 * h * (1.0 + jax.lax.erf(h * (1.0 / math.sqrt(2.0))))

    # Accumulate the second matmul: (N, tk)@(tk, Dcross) -> f32 accumulator.
    acc_ref[...] += jnp.dot(h.astype(jnp.bfloat16), w2_ref[...],
                            preferred_element_type=jnp.float32)

    @pl.when(k == nk - 1)
    def _():
        y = acc_ref[...] + b2_ref[...].astype(jnp.float32)
        # LayerNorm over the last dim, eps = 1e-5 (torch default), stats in f32.
        mean = jnp.mean(y, axis=-1, keepdims=True)
        var = jnp.mean(jnp.square(y - mean), axis=-1, keepdims=True)
        y_hat = (y - mean) * jax.lax.rsqrt(var + 1e-5)
        o_ref[...] = (y_hat * g_ref[...].astype(jnp.float32)
                      + beta_ref[...].astype(jnp.float32)).astype(o_ref.dtype)


def _pick_k_tile(dh):
    for tk in (512, 256, 128):
        if dh % tk == 0:
            return tk
    return dh  # fall back to a full-extent block


def audio_proj_forward(x2d, params):
    """x2d: (N, clip_dim) float32 -> (N, cross_dim) float32."""
    n, dclip = x2d.shape
    dh = params["w1"].shape[1]
    dcross = params["w2"].shape[1]
    tk = _pick_k_tile(dh)
    nk = dh // tk

    x_bf16 = x2d.astype(jnp.bfloat16)  # bf16 inputs for the MXU / halved HBM traffic

    grid_spec = pltpu.PrefetchScalarGridSpec(
        num_scalar_prefetch=0,
        grid=(nk,),
        in_specs=[
            # x is grid-invariant -> stays resident in VMEM across all K steps.
            pl.BlockSpec((n, dclip), lambda k: (0, 0)),
            # Weight / bias blocks stream along the hidden (reduction) axis.
            pl.BlockSpec((dclip, tk), lambda k: (0, k)),
            pl.BlockSpec((1, tk), lambda k: (0, k)),
            pl.BlockSpec((tk, dcross), lambda k: (k, 0)),
            # Grid-invariant LN / bias params (loaded once, no per-step broadcast).
            pl.BlockSpec((1, dcross), lambda k: (0, 0)),
            pl.BlockSpec((1, dcross), lambda k: (0, 0)),
            pl.BlockSpec((1, dcross), lambda k: (0, 0)),
        ],
        out_specs=pl.BlockSpec((n, dcross), lambda k: (0, 0)),
        scratch_shapes=[pltpu.VMEM((n, dcross), jnp.float32)],
    )
    return pl.pallas_call(
        _audio_proj_kernel,
        out_shape=jax.ShapeDtypeStruct((n, dcross), jnp.float32),
        grid_spec=grid_spec,
        compiler_params=pltpu.CompilerParams(
            # single grid axis is the hidden-dim reduction
            dimension_semantics=("arbitrary",),
            # K-tiling keeps per-step VMEM tiny; 48 MiB is safe headroom on all gens.
            vmem_limit_bytes=48 * 1024 * 1024,
        ),
    )(x_bf16, params["w1"], params["b1"], params["w2"], params["b2"],
      params["ln_g"], params["ln_b"])


# ----------------------------------------------------------------------------
# Surrogate ControlNet: channel-first, lane-dense, VPU-only kernel
# ----------------------------------------------------------------------------
def _controlnet_kernel(inj_ref, wc_ref, wm_ref, lat_ref, cond_ref, out_ref,
                       *, n_lat_c, n_cond_c):
    bi = pl.program_id(0)
    lat = lat_ref[...].astype(jnp.float32)      # (C,  TP)  spatial on lanes
    cond = cond_ref[...].astype(jnp.float32)    # (Cc, TP)

    # h[c, :] = lat[c, :] + sum_q w_cond[q, c] * cond[q, :] + inject[b, c]
    # Channel counts are tiny (3-4): unrolled VPU broadcast-FMAs, no MXU.
    h_rows = []
    for c in range(n_lat_c):
        acc = lat[c:c + 1, :] + inj_ref[bi, c]
        for q in range(n_cond_c):
            acc = acc + wc_ref[q, c] * cond[q:q + 1, :]
        h_rows.append(acc)
    h = jnp.concatenate(h_rows, axis=0)         # (C, TP)

    th = jnp.tanh(h)
    # mid[c, :] = sum_q w_mid[q, c] * tanh(h)[q, :]
    mid_rows = []
    for c in range(n_lat_c):
        acc = wm_ref[0, c] * th[0:1, :]
        for q in range(1, n_lat_c):
            acc = acc + wm_ref[q, c] * th[q:q + 1, :]
        mid_rows.append(acc)
    mid = jnp.concatenate(mid_rows, axis=0)     # (C, TP)

    # Fused writeback: one (2*C, TP) lane-dense slab (down rows, then mid rows).
    out_ref[...] = jnp.concatenate([h, mid], axis=0).astype(out_ref.dtype)


def _pick_spatial_tile(hw, max_tile=512):
    if hw % 128 != 0:
        return hw  # full-extent block is always legal
    tp = min(max_tile, hw)
    while hw % tp != 0:
        tp -= 128
    return tp


def controlnet_forward(noisy_latents, timesteps, controlnet_image, audio_emb, params):
    """noisy_latents: (B, C, H, W);  controlnet_image: (B, Cc, H, W);
       timesteps: (B,);  audio_emb: (B, S, Dcross).
       Returns (down_block_res_samples, mid_block_res_sample), both NCHW."""
    b, c, hh, ww = noisy_latents.shape
    cc = controlnet_image.shape[1]
    hw = hh * ww

    # Keep NCHW; just flatten spatial so H*W sits on the lane axis (no transposes).
    lat = noisy_latents.reshape(b, c, hw)
    cond = controlnet_image.reshape(b, cc, hw)

    # Hoisted injection: identical for every pixel of a batch, so compute it once
    # as a tiny (B, Dcross)@(Dcross, C) matmul + per-batch timestep add and pass
    # the resulting (B, C) table through SMEM.
    audio_pooled = jnp.mean(audio_emb, axis=1)                              # (B, Dcross)
    inject = (timesteps.astype(jnp.float32)[:, None]
              + jnp.dot(audio_pooled, params["w_audio"]))                   # (B, C)

    tp = _pick_spatial_tile(hw)
    n_sp = hw // tp

    smem_spec = pl.BlockSpec(memory_space=pltpu.MemorySpace.SMEM)
    grid_spec = pltpu.PrefetchScalarGridSpec(
        num_scalar_prefetch=0,
        grid=(b, n_sp),
        in_specs=[
            smem_spec,                                                       # inject (B, C)
            smem_spec,                                                       # w_cond (Cc, C)
            smem_spec,                                                       # w_mid  (C, C)
            pl.BlockSpec((None, c, tp), lambda bi, si: (bi, 0, si)),         # latents
            pl.BlockSpec((None, cc, tp), lambda bi, si: (bi, 0, si)),        # cond image
        ],
        out_specs=pl.BlockSpec((None, 2 * c, tp), lambda bi, si: (bi, 0, si)),
    )
    out = pl.pallas_call(
        partial(_controlnet_kernel, n_lat_c=c, n_cond_c=cc),
        out_shape=jax.ShapeDtypeStruct((b, 2 * c, hw), jnp.float32),
        grid_spec=grid_spec,
        compiler_params=pltpu.CompilerParams(
            dimension_semantics=("parallel", "parallel")),  # megacore on v7x
    )(inject, params["w_cond"], params["w_mid"], lat, cond)

    down = (out[:, :c, :].reshape(b, c, hh, ww),)
    mid = out[:, c:, :].reshape(b, c, hh, ww)
    return down, mid


# ----------------------------------------------------------------------------
# SytleNet forward
# ----------------------------------------------------------------------------
def sytlenet_forward(noisy_latents, timesteps, controlnet_image, audio_emeds, params):
    # if len(audio_emeds.shape) == 2: audio_emeds = audio_emeds.unsqueeze(1)
    if audio_emeds.ndim == 2:
        audio_emeds = audio_emeds[:, None, :]
    b, s, dclip = audio_emeds.shape
    audio_flat = audio_emeds.reshape(b * s, dclip)
    audio_emb = audio_proj_forward(audio_flat, params["audio_proj"]).reshape(b, s, -1)
    return controlnet_forward(noisy_latents, timesteps, controlnet_image,
                              audio_emb, params["controlnet"])


# ----------------------------------------------------------------------------
# Deterministic parameter init
# ----------------------------------------------------------------------------
def init_params(key, clip_dim, cross_dim, latent_c, cond_c):
    mult = 4
    hidden = clip_dim * mult
    ks = jax.random.split(key, 8)
    scale = lambda fan_in: 1.0 / math.sqrt(fan_in)
    audio_proj = {
        # bf16 weights at rest: MXU-native on v5e/v6e/v7x, halves weight HBM traffic.
        "w1": (jax.random.normal(ks[0], (clip_dim, hidden), jnp.float32)
               * scale(clip_dim)).astype(jnp.bfloat16),
        "b1": jax.random.normal(ks[1], (1, hidden), jnp.float32) * 0.01,
        "w2": (jax.random.normal(ks[2], (hidden, cross_dim), jnp.float32)
               * scale(hidden)).astype(jnp.bfloat16),
        "b2": jax.random.normal(ks[3], (1, cross_dim), jnp.float32) * 0.01,
        "ln_g": jnp.ones((1, cross_dim), jnp.float32),
        "ln_b": jnp.zeros((1, cross_dim), jnp.float32),
    }
    controlnet = {
        "w_cond": jax.random.normal(ks[4], (cond_c, latent_c), jnp.float32) * scale(cond_c),
        "w_audio": jax.random.normal(ks[5], (cross_dim, latent_c), jnp.float32) * scale(cross_dim),
        "w_mid": jax.random.normal(ks[6], (latent_c, latent_c), jnp.float32) * scale(latent_c),
    }
    return {"audio_proj": audio_proj, "controlnet": controlnet}


if __name__ == "__main__":
    # Small shapes consistent with the module structure.
    B, S = 2, 1
    CLIP_DIM, CROSS_DIM = 256, 128      # (512 / 1024 in the real model)
    LATENT_C, COND_C, H, W = 4, 3, 16, 16

    key = jax.random.PRNGKey(0)
    k_in, k_p = jax.random.split(key)
    k1, k2, k3 = jax.random.split(k_in, 3)

    noisy_latents = jax.random.normal(k1, (B, LATENT_C, H, W), jnp.float32)
    timesteps = jnp.array([10.0, 500.0], jnp.float32)
    controlnet_image = jax.random.normal(k2, (B, COND_C, H, W), jnp.float32)
    audio_emeds = jax.random.normal(k3, (B, CLIP_DIM), jnp.float32)  # 2-D -> unsqueezed inside

    params = init_params(k_p, CLIP_DIM, CROSS_DIM, LATENT_C, COND_C)

    down, mid = jax.jit(partial(sytlenet_forward, params=params))(
        noisy_latents, timesteps, controlnet_image, audio_emeds)
    jax.block_until_ready(mid)
    jax.block_until_ready(down)

    assert down[0].shape == (B, LATENT_C, H, W)
    assert mid.shape == (B, LATENT_C, H, W)
    assert bool(jnp.all(jnp.isfinite(down[0])))
    assert bool(jnp.all(jnp.isfinite(mid)))
    print("KERNEL_OK")
</pallas_src>

<mosaic_0001>
module attributes {stable_mosaic.version = 11 : i64} {
  func.func @_audio_proj_kernel(%arg0: i32, %arg1: memref<2x256xbf16, #tpu.memory_space<vmem>>, %arg2: memref<256x512xbf16, #tpu.memory_space<vmem>>, %arg3: memref<1x512xf32, #tpu.memory_space<vmem>>, %arg4: memref<512x128xbf16, #tpu.memory_space<vmem>>, %arg5: memref<1x128xf32, #tpu.memory_space<vmem>>, %arg6: memref<1x128xf32, #tpu.memory_space<vmem>>, %arg7: memref<1x128xf32, #tpu.memory_space<vmem>>, %arg8: memref<2x128xf32, #tpu.memory_space<vmem>>, %arg9: memref<2x128xf32, #tpu.memory_space<vmem>>) attributes {dimension_semantics = [#tpu.dimension_semantics<arbitrary>], iteration_bounds = array<i64: 2>, scalar_prefetch = 0 : i64, scratch_operands = 1 : i64, tpu.core_type = #tpu.core_type<tc>, window_params = [{pipeline_mode = #tpu.pipeline_mode<synchronous>, transform_indices = @transform_0, window_bounds = array<i64: 2, 256>}, {transform_indices = @transform_1, window_bounds = array<i64: 256, 512>}, {transform_indices = @transform_2, window_bounds = array<i64: 1, 512>}, {transform_indices = @transform_3, window_bounds = array<i64: 512, 128>}, {pipeline_mode = #tpu.pipeline_mode<synchronous>, transform_indices = @transform_4, window_bounds = array<i64: 1, 128>}, {pipeline_mode = #tpu.pipeline_mode<synchronous>, transform_indices = @transform_5, window_bounds = array<i64: 1, 128>}, {pipeline_mode = #tpu.pipeline_mode<synchronous>, transform_indices = @transform_6, window_bounds = array<i64: 1, 128>}, {pipeline_mode = #tpu.pipeline_mode<synchronous>, transform_indices = @transform_7, window_bounds = array<i64: 2, 128>}]} {
    %c0_i32 = arith.constant 0 : i32
    %0 = arith.cmpi eq, %arg0, %c0_i32 : i32
    %1 = arith.extui %0 : i1 to i32
    %c0_i32_0 = arith.constant 0 : i32
    %2 = arith.cmpi ne, %1, %c0_i32_0 : i32
    scf.if %2 {
      %cst_17 = arith.constant 0.000000e+00 : f32
      %26 = vector.broadcast %cst_17 : f32 to vector<2x128xf32>
      %c0_18 = arith.constant 0 : index
      %c0_19 = arith.constant 0 : index
      %27 = vector.load %arg9[%c0_18, %c0_19] : memref<2x128xf32, #tpu.memory_space<vmem>>, vector<2x128xf32>
      tpu.vector_store %arg9[%c0_18, %c0_19], %26 {strides = array<i32>} : memref<2x128xf32, #tpu.memory_space<vmem>>, vector<2x128xf32>,
    } else {
    }
    %c0 = arith.constant 0 : index
    %c0_1 = arith.constant 0 : index
    %3 = vector.load %arg1[%c0, %c0_1] : memref<2x256xbf16, #tpu.memory_space<vmem>>, vector<2x256xbf16>
    %c0_2 = arith.constant 0 : index
    %c0_3 = arith.constant 0 : index
    %4 = vector.load %arg2[%c0_2, %c0_3] : memref<256x512xbf16, #tpu.memory_space<vmem>>, vector<256x512xbf16>
    %cst = arith.constant dense<0.000000e+00> : vector<2x512xf32>
    %5 = tpu.matmul %3, %4, %cst {dimension_numbers = #tpu.dot_dimension_numbers<[1], [0], [0], [1], [0, 0, 1, 1], [], []>} : vector<2x256xbf16>, vector<256x512xbf16>, vector<2x512xf32> -> vector<2x512xf32>
    %c0_4 = arith.constant 0 : index
    %c0_5 = arith.constant 0 : index
    %6 = vector.load %arg3[%c0_4, %c0_5] : memref<1x512xf32, #tpu.memory_space<vmem>>, vector<1x512xf32>
    %7 = vector.broadcast %6 : vector<1x512xf32> to vector<2x512xf32>
    %8 = arith.addf %5, %7 : vector<2x512xf32>
    %cst_6 = arith.constant 5.000000e-01 : f32
    %9 = vector.broadcast %cst_6 : f32 to vector<2x512xf32>
    %10 = arith.mulf %9, %8 : vector<2x512xf32>
    %cst_7 = arith.constant 0.707106769 : f32
    %11 = vector.broadcast %cst_7 : f32 to vector<2x512xf32>
    %12 = arith.mulf %8, %11 : vector<2x512xf32>
    %13 = math.erf %12 : vector<2x512xf32>
    %cst_8 = arith.constant 1.000000e+00 : f32
    %14 = vector.broadcast %cst_8 : f32 to vector<2x512xf32>
    %15 = arith.addf %14, %13 : vector<2x512xf32>
    %16 = arith.mulf %10, %15 : vector<2x512xf32>
    %c0_9 = arith.constant 0 : index
    %c0_10 = arith.constant 0 : index
    %17 = vector.load %arg9[%c0_9, %c0_10] : memref<2x128xf32, #tpu.memory_space<vmem>>, vector<2x128xf32>
    %18 = arith.truncf %16 : vector<2x512xf32> to vector<2x512xbf16>
    %c0_11 = arith.constant 0 : index
    %c0_12 = arith.constant 0 : index
    %19 = vector.load %arg4[%c0_11, %c0_12] : memref<512x128xbf16, #tpu.memory_space<vmem>>, vector<512x128xbf16>
    %cst_13 = arith.constant dense<0.000000e+00> : vector<2x128xf32>
    %20 = tpu.matmul %18, %19, %cst_13 {dimension_numbers = #tpu.dot_dimension_numbers<[1], [0], [0], [1], [0, 0, 1, 1], [], []>} : vector<2x512xbf16>, vector<512x128xbf16>, vector<2x128xf32> -> vector<2x128xf32>
    %21 = arith.addf %17, %20 : vector<2x128xf32>
    %c0_14 = arith.constant 0 : index
    %c0_15 = arith.constant 0 : index
    %22 = vector.load %arg9[%c0_14, %c0_15] : memref<2x128xf32, #tpu.memory_space<vmem>>, vector<2x128xf32>
    tpu.vector_store %arg9[%c0_14, %c0_15], %21 {strides = array<i32>} : memref<2x128xf32, #tpu.memory_space<vmem>>, vector<2x128xf32>,
    %c1_i32 = arith.constant 1 : i32
    %23 = arith.cmpi eq, %arg0, %c1_i32 : i32
    %24 = arith.extui %23 : i1 to i32
    %c0_i32_16 = arith.constant 0 : i32
    %25 = arith.cmpi ne, %24, %c0_i32_16 : i32
    scf.if %25 {
      %c0_17 = arith.constant 0 : index
      %c0_18 = arith.constant 0 : index
      %26 = vector.load %arg9[%c0_17, %c0_18] : memref<2x128xf32, #tpu.memory_space<vmem>>, vector<2x128xf32>
      %c0_19 = arith.constant 0 : index
      %c0_20 = arith.constant 0 : index
      %27 = vector.load %arg5[%c0_19, %c0_20] : memref<1x128xf32, #tpu.memory_space<vmem>>, vector<1x128xf32>
      %28 = vector.broadcast %27 : vector<1x128xf32> to vector<2x128xf32>
      %29 = arith.addf %26, %28 : vector<2x128xf32>
      %cst_21 = arith.constant dense<0.000000e+00> : vector<2xf32>
      %30 = vector.multi_reduction <add>, %29, %cst_21 [1] : vector<2x128xf32> to vector<2xf32>
      %31 = vector.shape_cast %30 : vector<2xf32> to vector<2x1xf32>
      %cst_22 = arith.constant 1.280000e+02 : f32
      %32 = vector.broadcast %cst_22 : f32 to vector<2x1xf32>
      %33 = arith.divf %31, %32 : vector<2x1xf32>
      %34 = vector.broadcast %33 : vector<2x1xf32> to vector<2x128xf32>
      %35 = arith.subf %29, %34 : vector<2x128xf32>
      %36 = arith.mulf %35, %35 : vector<2x128xf32>
      %cst_23 = arith.constant dense<0.000000e+00> : vector<2xf32>
      %37 = vector.multi_reduction <add>, %36, %cst_23 [1] : vector<2x128xf32> to vector<2xf32>
      %38 = vector.shape_cast %37 : vector<2xf32> to vector<2x1xf32>
      %cst_24 = arith.constant 1.280000e+02 : f32
      %39 = vector.broadcast %cst_24 : f32 to vector<2x1xf32>
      %40 = arith.divf %38, %39 : vector<2x1xf32>
      %41 = vector.broadcast %33 : vector<2x1xf32> to vector<2x128xf32>
      %42 = arith.subf %29, %41 : vector<2x128xf32>
      %cst_25 = arith.constant 9.99999974E-6 : f32
      %43 = vector.broadcast %cst_25 : f32 to vector<2x1xf32>
      %44 = arith.addf %40, %43 : vector<2x1xf32>
      %45 = math.rsqrt %44 : vector<2x1xf32>
      %46 = vector.broadcast %45 : vector<2x1xf32> to vector<2x128xf32>
      %47 = arith.mulf %42, %46 : vector<2x128xf32>
      %c0_26 = arith.constant 0 : index
      %c0_27 = arith.constant 0 : index
      %48 = vector.load %arg6[%c0_26, %c0_27] : memref<1x128xf32, #tpu.memory_space<vmem>>, vector<1x128xf32>
      %49 = vector.broadcast %48 : vector<1x128xf32> to vector<2x128xf32>
      %50 = arith.mulf %47, %49 : vector<2x128xf32>
      %c0_28 = arith.constant 0 : index
      %c0_29 = arith.constant 0 : index
      %51 = vector.load %arg7[%c0_28, %c0_29] : memref<1x128xf32, #tpu.memory_space<vmem>>, vector<1x128xf32>
      %52 = vector.broadcast %51 : vector<1x128xf32> to vector<2x128xf32>
      %53 = arith.addf %50, %52 : vector<2x128xf32>
      %c0_30 = arith.constant 0 : index
      %c0_31 = arith.constant 0 : index
      %54 = vector.load %arg8[%c0_30, %c0_31] : memref<2x128xf32, #tpu.memory_space<vmem>>, vector<2x128xf32>
      tpu.vector_store %arg8[%c0_30, %c0_31], %53 {strides = array<i32>} : memref<2x128xf32, #tpu.memory_space<vmem>>, vector<2x128xf32>,
    } else {
    }
    return
  }
  func.func @transform_0(%arg0: i32) -> (i32, i32) {
    %c0_i32 = arith.constant 0 : i32
    %c0_i32_0 = arith.constant 0 : i32
    %c0_i32_1 = arith.constant 0 : i32
    return %c0_i32, %c0_i32_0 : i32, i32
  }
  func.func @transform_1(%arg0: i32) -> (i32, i32) {
    %c0_i32 = arith.constant 0 : i32
    %c0_i32_0 = arith.constant 0 : i32
    return %c0_i32, %arg0 : i32, i32
  }
  func.func @transform_2(%arg0: i32) -> (i32, i32) {
    %c0_i32 = arith.constant 0 : i32
    %c0_i32_0 = arith.constant 0 : i32
    return %c0_i32, %arg0 : i32, i32
  }
  func.func @transform_3(%arg0: i32) -> (i32, i32) {
    %c0_i32 = arith.constant 0 : i32
    %c0_i32_0 = arith.constant 0 : i32
    return %arg0, %c0_i32 : i32, i32
  }
  func.func @transform_4(%arg0: i32) -> (i32, i32) {
    %c0_i32 = arith.constant 0 : i32
    %c0_i32_0 = arith.constant 0 : i32
    %c0_i32_1 = arith.constant 0 : i32
    return %c0_i32, %c0_i32_0 : i32, i32
  }
  func.func @transform_5(%arg0: i32) -> (i32, i32) {
    %c0_i32 = arith.constant 0 : i32
    %c0_i32_0 = arith.constant 0 : i32
    %c0_i32_1 = arith.constant 0 : i32
    return %c0_i32, %c0_i32_0 : i32, i32
  }
  func.func @transform_6(%arg0: i32) -> (i32, i32) {
    %c0_i32 = arith.constant 0 : i32
    %c0_i32_0 = arith.constant 0 : i32
    %c0_i32_1 = arith.constant 0 : i32
    return %c0_i32, %c0_i32_0 : i32, i32
  }
  func.func @transform_7(%arg0: i32) -> (i32, i32) {
    %c0_i32 = arith.constant 0 : i32
    %c0_i32_0 = arith.constant 0 : i32
    %c0_i32_1 = arith.constant 0 : i32
    return %c0_i32, %c0_i32_0 : i32, i32
  }
}

module attributes {stable_mosaic.version = 11 : i64} {
  func.func @_controlnet_kernel(%arg0: i32, %arg1: i32, %arg2: memref<2x4xf32, #tpu.memory_space<smem>>, %arg3: memref<3x4xf32, #tpu.memory_space<smem>>, %arg4: memref<4x4xf32, #tpu.memory_space<smem>>, %arg5: memref<1x4x256xf32, #tpu.memory_space<vmem>>, %arg6: memref<1x3x256xf32, #tpu.memory_space<vmem>>, %arg7: memref<1x8x256xf32, #tpu.memory_space<vmem>>) attributes {dimension_semantics = [#tpu.dimension_semantics<parallel>, #tpu.dimension_semantics<parallel>], iteration_bounds = array<i64: 2, 1>, scalar_prefetch = 0 : i64, scratch_operands = 0 : i64, tpu.core_type = #tpu.core_type<tc>, window_params = [{transform_indices = @transform_0, window_bounds = array<i64: 2, 4>}, {transform_indices = @transform_1, window_bounds = array<i64: 3, 4>}, {transform_indices = @transform_2, window_bounds = array<i64: 4, 4>}, {transform_indices = @transform_3, window_bounds = array<i64: 1, 4, 256>}, {transform_indices = @transform_4, window_bounds = array<i64: 1, 3, 256>}, {transform_indices = @transform_5, window_bounds = array<i64: 1, 8, 256>}]} {
    %c0 = arith.constant 0 : index
    %c0_0 = arith.constant 0 : index
    %c0_1 = arith.constant 0 : index
    %0 = vector.load %arg5[%c0, %c0_0, %c0_1] : memref<1x4x256xf32, #tpu.memory_space<vmem>>, vector<1x4x256xf32>
    %1 = vector.shape_cast %0 : vector<1x4x256xf32> to vector<4x256xf32>
    %c0_2 = arith.constant 0 : index
    %c0_3 = arith.constant 0 : index
    %c0_4 = arith.constant 0 : index
    %2 = vector.load %arg6[%c0_2, %c0_3, %c0_4] : memref<1x3x256xf32, #tpu.memory_space<vmem>>, vector<1x3x256xf32>
    %3 = vector.shape_cast %2 : vector<1x3x256xf32> to vector<3x256xf32>
    %4 = vector.extract_strided_slice %1 {offsets = [0, 0], sizes = [1, 256], strides = [1, 1]} : vector<4x256xf32> to vector<1x256xf32>
    %5 = arith.index_cast %arg0 : i32 to index
    %c0_5 = arith.constant 0 : index
    %6 = memref.load %arg2[%5, %c0_5] : memref<2x4xf32, #tpu.memory_space<smem>>
    %7 = vector.broadcast %6 : f32 to vector<1x256xf32>
    %8 = arith.addf %4, %7 : vector<1x256xf32>
    %c0_6 = arith.constant 0 : index
    %c0_7 = arith.constant 0 : index
    %9 = memref.load %arg3[%c0_6, %c0_7] : memref<3x4xf32, #tpu.memory_space<smem>>
    %10 = vector.extract_strided_slice %3 {offsets = [0, 0], sizes = [1, 256], strides = [1, 1]} : vector<3x256xf32> to vector<1x256xf32>
    %11 = vector.broadcast %9 : f32 to vector<1x256xf32>
    %12 = arith.mulf %11, %10 : vector<1x256xf32>
    %13 = arith.addf %8, %12 : vector<1x256xf32>
    %c1 = arith.constant 1 : index
    %c0_8 = arith.constant 0 : index
    %14 = memref.load %arg3[%c1, %c0_8] : memref<3x4xf32, #tpu.memory_space<smem>>
    %15 = vector.extract_strided_slice %3 {offsets = [1, 0], sizes = [1, 256], strides = [1, 1]} : vector<3x256xf32> to vector<1x256xf32>
    %16 = vector.broadcast %14 : f32 to vector<1x256xf32>
    %17 = arith.mulf %16, %15 : vector<1x256xf32>
    %18 = arith.addf %13, %17 : vector<1x256xf32>
    %c2 = arith.constant 2 : index
    %c0_9 = arith.constant 0 : index
    %19 = memref.load %arg3[%c2, %c0_9] : memref<3x4xf32, #tpu.memory_space<smem>>
    %20 = vector.extract_strided_slice %3 {offsets = [2, 0], sizes = [1, 256], strides = [1, 1]} : vector<3x256xf32> to vector<1x256xf32>
    %21 = vector.broadcast %19 : f32 to vector<1x256xf32>
    %22 = arith.mulf %21, %20 : vector<1x256xf32>
    %23 = arith.addf %18, %22 : vector<1x256xf32>
    %24 = vector.extract_strided_slice %1 {offsets = [1, 0], sizes = [1, 256], strides = [1, 1]} : vector<4x256xf32> to vector<1x256xf32>
    %25 = arith.index_cast %arg0 : i32 to index
    %c1_10 = arith.constant 1 : index
    %26 = memref.load %arg2[%25, %c1_10] : memref<2x4xf32, #tpu.memory_space<smem>>
    %27 = vector.broadcast %26 : f32 to vector<1x256xf32>
    %28 = arith.addf %24, %27 : vector<1x256xf32>
    %c0_11 = arith.constant 0 : index
    %c1_12 = arith.constant 1 : index
    %29 = memref.load %arg3[%c0_11, %c1_12] : memref<3x4xf32, #tpu.memory_space<smem>>
    %30 = vector.extract_strided_slice %3 {offsets = [0, 0], sizes = [1, 256], strides = [1, 1]} : vector<3x256xf32> to vector<1x256xf32>
    %31 = vector.broadcast %29 : f32 to vector<1x256xf32>
    %32 = arith.mulf %31, %30 : vector<1x256xf32>
    %33 = arith.addf %28, %32 : vector<1x256xf32>
    %c1_13 = arith.constant 1 : index
    %c1_14 = arith.constant 1 : index
    %34 = memref.load %arg3[%c1_13, %c1_14] : memref<3x4xf32, #tpu.memory_space<smem>>
    %35 = vector.extract_strided_slice %3 {offsets = [1, 0], sizes = [1, 256], strides = [1, 1]} : vector<3x256xf32> to vector<1x256xf32>
    %36 = vector.broadcast %34 : f32 to vector<1x256xf32>
    %37 = arith.mulf %36, %35 : vector<1x256xf32>
    %38 = arith.addf %33, %37 : vector<1x256xf32>
    %c2_15 = arith.constant 2 : index
    %c1_16 = arith.constant 1 : index
    %39 = memref.load %arg3[%c2_15, %c1_16] : memref<3x4xf32, #tpu.memory_space<smem>>
    %40 = vector.extract_strided_slice %3 {offsets = [2, 0], sizes = [1, 256], strides = [1, 1]} : vector<3x256xf32> to vector<1x256xf32>
    %41 = vector.broadcast %39 : f32 to vector<1x256xf32>
    %42 = arith.mulf %41, %40 : vector<1x256xf32>
    %43 = arith.addf %38, %42 : vector<1x256xf32>
    %44 = vector.extract_strided_slice %1 {offsets = [2, 0], sizes = [1, 256], strides = [1, 1]} : vector<4x256xf32> to vector<1x256xf32>
    %45 = arith.index_cast %arg0 : i32 to index
    %c2_17 = arith.constant 2 : index
    %46 = memref.load %arg2[%45, %c2_17] : memref<2x4xf32, #tpu.memory_space<smem>>
    %47 = vector.broadcast %46 : f32 to vector<1x256xf32>
    %48 = arith.addf %44, %47 : vector<1x256xf32>
    %c0_18 = arith.constant 0 : index
    %c2_19 = arith.constant 2 : index
    %49 = memref.load %arg3[%c0_18, %c2_19] : memref<3x4xf32, #tpu.memory_space<smem>>
    %50 = vector.extract_strided_slice %3 {offsets = [0, 0], sizes = [1, 256], strides = [1, 1]} : vector<3x256xf32> to vector<1x256xf32>
    %51 = vector.broadcast %49 : f32 to vector<1x256xf32>
    %52 = arith.mulf %51, %50 : vector<1x256xf32>
    %53 = arith.addf %48, %52 : vector<1x256xf32>
    %c1_20 = arith.constant 1 : index
    %c2_21 = arith.constant 2 : index
    %54 = memref.load %arg3[%c1_20, %c2_21] : memref<3x4xf32, #tpu.memory_space<smem>>
    %55 = vector.extract_strided_slice %3 {offsets = [1, 0], sizes = [1, 256], strides = [1, 1]} : vector<3x256xf32> to vector<1x256xf32>
    %56 = vector.broadcast %54 : f32 to vector<1x256xf32>
    %57 = arith.mulf %56, %55 : vector<1x256xf32>
    %58 = arith.addf %53, %57 : vector<1x256xf32>
    %c2_22 = arith.constant 2 : index
    %c2_23 = arith.constant 2 : index
    %59 = memref.load %arg3[%c2_22, %c2_23] : memref<3x4xf32, #tpu.memory_space<smem>>
    %60 = vector.extract_strided_slice %3 {offsets = [2, 0], sizes = [1, 256], strides = [1, 1]} : vector<3x256xf32> to vector<1x256xf32>
    %61 = vector.broadcast %59 : f32 to vector<1x256xf32>
    %62 = arith.mulf %61, %60 : vector<1x256xf32>
    %63 = arith.addf %58, %62 : vector<1x256xf32>
    %64 = vector.extract_strided_slice %1 {offsets = [3, 0], sizes = [1, 256], strides = [1, 1]} : vector<4x256xf32> to vector<1x256xf32>
    %65 = arith.index_cast %arg0 : i32 to index
    %c3 = arith.constant 3 : index
    %66 = memref.load %arg2[%65, %c3] : memref<2x4xf32, #tpu.memory_space<smem>>
    %67 = vector.broadcast %66 : f32 to vector<1x256xf32>
    %68 = arith.addf %64, %67 : vector<1x256xf32>
    %c0_24 = arith.constant 0 : index
    %c3_25 = arith.constant 3 : index
    %69 = memref.load %arg3[%c0_24, %c3_25] : memref<3x4xf32, #tpu.memory_space<smem>>
    %70 = vector.extract_strided_slice %3 {offsets = [0, 0], sizes = [1, 256], strides = [1, 1]} : vector<3x256xf32> to vector<1x256xf32>
    %71 = vector.broadcast %69 : f32 to vector<1x256xf32>
    %72 = arith.mulf %71, %70 : vector<1x256xf32>
    %73 = arith.addf %68, %72 : vector<1x256xf32>
    %c1_26 = arith.constant 1 : index
    %c3_27 = arith.constant 3 : index
    %74 = memref.load %arg3[%c1_26, %c3_27] : memref<3x4xf32, #tpu.memory_space<smem>>
    %75 = vector.extract_strided_slice %3 {offsets = [1, 0], sizes = [1, 256], strides = [1, 1]} : vector<3x256xf32> to vector<1x256xf32>
    %76 = vector.broadcast %74 : f32 to vector<1x256xf32>
    %77 = arith.mulf %76, %75 : vector<1x256xf32>
    %78 = arith.addf %73, %77 : vector<1x256xf32>
    %c2_28 = arith.constant 2 : index
    %c3_29 = arith.constant 3 : index
    %79 = memref.load %arg3[%c2_28, %c3_29] : memref<3x4xf32, #tpu.memory_space<smem>>
    %80 = vector.extract_strided_slice %3 {offsets = [2, 0], sizes = [1, 256], strides = [1, 1]} : vector<3x256xf32> to vector<1x256xf32>
    %81 = vector.broadcast %79 : f32 to vector<1x256xf32>
    %82 = arith.mulf %81, %80 : vector<1x256xf32>
    %83 = arith.addf %78, %82 : vector<1x256xf32>
    %84 = tpu.concatenate %23, %43, %63, %83 in 0 : vector<1x256xf32>, vector<1x256xf32>, vector<1x256xf32>, vector<1x256xf32> -> vector<4x256xf32>
    %85 = math.tanh %84 : vector<4x256xf32>
    %c0_30 = arith.constant 0 : index
    %c0_31 = arith.constant 0 : index
    %86 = memref.load %arg4[%c0_30, %c0_31] : memref<4x4xf32, #tpu.memory_space<smem>>
    %87 = vector.extract_strided_slice %85 {offsets = [0, 0], sizes = [1, 256], strides = [1, 1]} : vector<4x256xf32> to vector<1x256xf32>
    %88 = vector.broadcast %86 : f32 to vector<1x256xf32>
    %89 = arith.mulf %88, %87 : vector<1x256xf32>
    %c1_32 = arith.constant 1 : index
    %c0_33 = arith.constant 0 : index
    %90 = memref.load %arg4[%c1_32, %c0_33] : memref<4x4xf32, #tpu.memory_space<smem>>
    %91 = vector.extract_strided_slice %85 {offsets = [1, 0], sizes = [1, 256], strides = [1, 1]} : vector<4x256xf32> to vector<1x256xf32>
    %92 = vector.broadcast %90 : f32 to vector<1x256xf32>
    %93 = arith.mulf %92, %91 : vector<1x256xf32>
    %94 = arith.addf %89, %93 : vector<1x256xf32>
    %c2_34 = arith.constant 2 : index
    %c0_35 = arith.constant 0 : index
    %95 = memref.load %arg4[%c2_34, %c0_35] : memref<4x4xf32, #tpu.memory_space<smem>>
    %96 = vector.extract_strided_slice %85 {offsets = [2, 0], sizes = [1, 256], strides = [1, 1]} : vector<4x256xf32> to vector<1x256xf32>
    %97 = vector.broadcast %95 : f32 to vector<1x256xf32>
    %98 = arith.mulf %97, %96 : vector<1x256xf32>
    %99 = arith.addf %94, %98 : vector<1x256xf32>
    %c3_36 = arith.constant 3 : index
    %c0_37 = arith.constant 0 : index
    %100 = memref.load %arg4[%c3_36, %c0_37] : memref<4x4xf32, #tpu.memory_space<smem>>
    %101 = vector.extract_strided_slice %85 {offsets = [3, 0], sizes = [1, 256], strides = [1, 1]} : vector<4x256xf32> to vector<1x256xf32>
    %102 = vector.broadcast %100 : f32 to vector<1x256xf32>
    %103 = arith.mulf %102, %101 : vector<1x256xf32>
    %104 = arith.addf %99, %103 : vector<1x256xf32>
    %c0_38 = arith.constant 0 : index
    %c1_39 = arith.constant 1 : index
    %105 = memref.load %arg4[%c0_38, %c1_39] : memref<4x4xf32, #tpu.memory_space<smem>>
    %106 = vector.extract_strided_slice %85 {offsets = [0, 0], sizes = [1, 256], strides = [1, 1]} : vector<4x256xf32> to vector<1x256xf32>
    %107 = vector.broadcast %105 : f32 to vector<1x256xf32>
    %108 = arith.mulf %107, %106 : vector<1x256xf32>
    %c1_40 = arith.constant 1 : index
    %c1_41 = arith.constant 1 : index
    %109 = memref.load %arg4[%c1_40, %c1_41] : memref<4x4xf32, #tpu.memory_space<smem>>
    %110 = vector.extract_strided_slice %85 {offsets = [1, 0], sizes = [1, 256], strides = [1, 1]} : vector<4x256xf32> to vector<1x256xf32>
    %111 = vector.broadcast %109 : f32 to vector<1x256xf32>
    %112 = arith.mulf %111, %110 : vector<1x256xf32>
    %113 = arith.addf %108, %112 : vector<1x256xf32>
    %c2_42 = arith.constant 2 : index
    %c1_43 = arith.constant 1 : index
    %114 = memref.load %arg4[%c2_42, %c1_43] : memref<4x4xf32, #tpu.memory_space<smem>>
    %115 = vector.extract_strided_slice %85 {offsets = [2, 0], sizes = [1, 256], strides = [1, 1]} : vector<4x256xf32> to vector<1x256xf32>
    %116 = vector.broadcast %114 : f32 to vector<1x256xf32>
    %117 = arith.mulf %116, %115 : vector<1x256xf32>
    %118 = arith.addf %113, %117 : vector<1x256xf32>
    %c3_44 = arith.constant 3 : index
    %c1_45 = arith.constant 1 : index
    %119 = memref.load %arg4[%c3_44, %c1_45] : memref<4x4xf32, #tpu.memory_space<smem>>
    %120 = vector.extract_strided_slice %85 {offsets = [3, 0], sizes = [1, 256], strides = [1, 1]} : vector<4x256xf32> to vector<1x256xf32>
    %121 = vector.broadcast %119 : f32 to vector<1x256xf32>
    %122 = arith.mulf %121, %120 : vector<1x256xf32>
    %123 = arith.addf %118, %122 : vector<1x256xf32>
    %c0_46 = arith.constant 0 : index
    %c2_47 = arith.constant 2 : index
    %124 = memref.load %arg4[%c0_46, %c2_47] : memref<4x4xf32, #tpu.memory_space<smem>>
    %125 = vector.extract_strided_slice %85 {offsets = [0, 0], sizes = [1, 256], strides = [1, 1]} : vector<4x256xf32> to vector<1x256xf32>
    %126 = vector.broadcast %124 : f32 to vector<1x256xf32>
    %127 = arith.mulf %126, %125 : vector<1x256xf32>
    %c1_48 = arith.constant 1 : index
    %c2_49 = arith.constant 2 : index
    %128 = memref.load %arg4[%c1_48, %c2_49] : memref<4x4xf32, #tpu.memory_space<smem>>
    %129 = vector.extract_strided_slice %85 {offsets = [1, 0], sizes = [1, 256], strides = [1, 1]} : vector<4x256xf32> to vector<1x256xf32>
    %130 = vector.broadcast %128 : f32 to vector<1x256xf32>
    %131 = arith.mulf %130, %129 : vector<1x256xf32>
    %132 = arith.addf %127, %131 : vector<1x256xf32>
    %c2_50 = arith.constant 2 : index
    %c2_51 = arith.constant 2 : index
    %133 = memref.load %arg4[%c2_50, %c2_51] : memref<4x4xf32, #tpu.memory_space<smem>>
    %134 = vector.extract_strided_slice %85 {offsets = [2, 0], sizes = [1, 256], strides = [1, 1]} : vector<4x256xf32> to vector<1x256xf32>
    %135 = vector.broadcast %133 : f32 to vector<1x256xf32>
    %136 = arith.mulf %135, %134 : vector<1x256xf32>
    %137 = arith.addf %132, %136 : vector<1x256xf32>
    %c3_52 = arith.constant 3 : index
    %c2_53 = arith.constant 2 : index
    %138 = memref.load %arg4[%c3_52, %c2_53] : memref<4x4xf32, #tpu.memory_space<smem>>
    %139 = vector.extract_strided_slice %85 {offsets = [3, 0], sizes = [1, 256], strides = [1, 1]} : vector<4x256xf32> to vector<1x256xf32>
    %140 = vector.broadcast %138 : f32 to vector<1x256xf32>
    %141 = arith.mulf %140, %139 : vector<1x256xf32>
    %142 = arith.addf %137, %141 : vector<1x256xf32>
    %c0_54 = arith.constant 0 : index
    %c3_55 = arith.constant 3 : index
    %143 = memref.load %arg4[%c0_54, %c3_55] : memref<4x4xf32, #tpu.memory_space<smem>>
    %144 = vector.extract_strided_slice %85 {offsets = [0, 0], sizes = [1, 256], strides = [1, 1]} : vector<4x256xf32> to vector<1x256xf32>
    %145 = vector.broadcast %143 : f32 to vector<1x256xf32>
    %146 = arith.mulf %145, %144 : vector<1x256xf32>
    %c1_56 = arith.constant 1 : index
    %c3_57 = arith.constant 3 : index
    %147 = memref.load %arg4[%c1_56, %c3_57] : memref<4x4xf32, #tpu.memory_space<smem>>
    %148 = vector.extract_strided_slice %85 {offsets = [1, 0], sizes = [1, 256], strides = [1, 1]} : vector<4x256xf32> to vector<1x256xf32>
    %149 = vector.broadcast %147 : f32 to vector<1x256xf32>
    %150 = arith.mulf %149, %148 : vector<1x256xf32>
    %151 = arith.addf %146, %150 : vector<1x256xf32>
    %c2_58 = arith.constant 2 : index
    %c3_59 = arith.constant 3 : index
    %152 = memref.load %arg4[%c2_58, %c3_59] : memref<4x4xf32, #tpu.memory_space<smem>>
    %153 = vector.extract_strided_slice %85 {offsets = [2, 0], sizes = [1, 256], strides = [1, 1]} : vector<4x256xf32> to vector<1x256xf32>
    %154 = vector.broadcast %152 : f32 to vector<1x256xf32>
    %155 = arith.mulf %154, %153 : vector<1x256xf32>
    %156 = arith.addf %151, %155 : vector<1x256xf32>
    %c3_60 = arith.constant 3 : index
    %c3_61 = arith.constant 3 : index
    %157 = memref.load %arg4[%c3_60, %c3_61] : memref<4x4xf32, #tpu.memory_space<smem>>
    %158 = vector.extract_strided_slice %85 {offsets = [3, 0], sizes = [1, 256], strides = [1, 1]} : vector<4x256xf32> to vector<1x256xf32>
    %159 = vector.broadcast %157 : f32 to vector<1x256xf32>
    %160 = arith.mulf %159, %158 : vector<1x256xf32>
    %161 = arith.addf %156, %160 : vector<1x256xf32>
    %162 = tpu.concatenate %104, %123, %142, %161 in 0 : vector<1x256xf32>, vector<1x256xf32>, vector<1x256xf32>, vector<1x256xf32> -> vector<4x256xf32>
    %163 = tpu.concatenate %84, %162 in 0 : vector<4x256xf32>, vector<4x256xf32> -> vector<8x256xf32>
    %c0_62 = arith.constant 0 : index
    %c0_63 = arith.constant 0 : index
    %c0_64 = arith.constant 0 : index
    %164 = vector.load %arg7[%c0_62, %c0_63, %c0_64] : memref<1x8x256xf32, #tpu.memory_space<vmem>>, vector<1x8x256xf32>
    %165 = vector.shape_cast %164 : vector<1x8x256xf32> to vector<8x256xf32>
    %166 = vector.shape_cast %163 : vector<8x256xf32> to vector<1x8x256xf32>
    tpu.vector_store %arg7[%c0_62, %c0_63, %c0_64], %166 {strides = array<i32>} : memref<1x8x256xf32, #tpu.memory_space<vmem>>, vector<1x8x256xf32>,
    return
  }
  func.func @transform_0(%arg0: i32, %arg1: i32) -> (i32, i32) {
    %c0_i32 = arith.constant 0 : i32
    %c0_i32_0 = arith.constant 0 : i32
    %c0_i32_1 = arith.constant 0 : i32
    return %c0_i32, %c0_i32_0 : i32, i32
  }
  func.func @transform_1(%arg0: i32, %arg1: i32) -> (i32, i32) {
    %c0_i32 = arith.constant 0 : i32
    %c0_i32_0 = arith.constant 0 : i32
    %c0_i32_1 = arith.constant 0 : i32
    return %c0_i32, %c0_i32_0 : i32, i32
  }
  func.func @transform_2(%arg0: i32, %arg1: i32) -> (i32, i32) {
    %c0_i32 = arith.constant 0 : i32
    %c0_i32_0 = arith.constant 0 : i32
    %c0_i32_1 = arith.constant 0 : i32
    return %c0_i32, %c0_i32_0 : i32, i32
  }
  func.func @transform_3(%arg0: i32, %arg1: i32) -> (i32, i32, i32) {
    %c0_i32 = arith.constant 0 : i32
    %c0_i32_0 = arith.constant 0 : i32
    return %arg0, %c0_i32, %arg1 : i32, i32, i32
  }
  func.func @transform_4(%arg0: i32, %arg1: i32) -> (i32, i32, i32) {
    %c0_i32 = arith.constant 0 : i32
    %c0_i32_0 = arith.constant 0 : i32
    return %arg0, %c0_i32, %arg1 : i32, i32, i32
  }
  func.func @transform_5(%arg0: i32, %arg1: i32) -> (i32, i32, i32) {
    %c0_i32 = arith.constant 0 : i32
    %c0_i32_0 = arith.constant 0 : i32
    return %arg0, %c0_i32, %arg1 : i32, i32, i32
  }
}

</mosaic_0001>

<llo_original>
// kernel: sytlenet_forward.3
$region0: #{sytlenet_forward.3}
  #allocation0 [shape = 'u32[]', space=smem, size = 0x4, offset = 0x4, fixed_abs, tag = 'smem constant byte address 0x4 - core index']
  #allocation1 [shape = 'u32[72,128]{1,0:T(1,128)}', space=vmem, size = 0x9000, scoped, tag = 'internal scratch']
  %s0 = inlined_call_operand.vmem [shape: f32[2,4], index: 0, kind: input, shape index: {}]
  %s1 = inlined_call_operand.vmem [shape: f32[3,4], index: 1, kind: input, shape index: {}]
  %s2 = inlined_call_operand.vmem [shape: f32[4,4], index: 2, kind: input, shape index: {}]
  %s3 = inlined_call_operand.vmem [shape: f32[2,4,256], index: 3, kind: input, shape index: {}]
  %s4 = inlined_call_operand.vmem [shape: f32[2,3,256], index: 4, kind: input, shape index: {}]
  %s5 = inlined_call_operand.vmem [shape: f32[2,8,256], index: 5, kind: output, shape index: {}]
  %s6 = sld [smem:[#allocation0]]
  $region65: #{sytlenet_forward.3} parent=0
    _
  %s8 = ssub.s32 1, %s6
  %s9 = scalar_select 0, %s8, %s6
  $region1: #{sytlenet_forward.3} parent=0
    #allocation2 [shape = 'u8[1024]{0}', space=smem, size = 0x400, scoped, tag = 'input window, operand 0, single buffered']
    #allocation3 [shape = 's32[2]{0}', space=sflag, size = 0x8, scoped, tag = 'scoped memory for sytlenet_forward.3']
    #allocation4 [shape = 'u8[2048]{0}', space=smem, size = 0x800, scoped, tag = 'input window, operand 1, single buffered']
    #allocation5 [shape = 's32[1]{0}', space=sflag, size = 0x4, scoped, tag = 'scoped memory for sytlenet_forward.3']
    #allocation6 [shape = 'u8[2048]{0}', space=smem, size = 0x800, scoped, tag = 'input window, operand 2, single buffered']
    %10 = vsyncpa [#allocation3], 0
    %11 = vsyncpa [#allocation5], 0
    loop: start=0, step=1, limit=4
    $region2: #{sytlenet_forward.3} parent=1 // loop_pre_header
      _
    $region3: #{sytlenet_forward.3} parent=1 // loop_header
      %s13 = sphi 0, %s17
      %p14 = scmp.ge.s32.totalorder %s13, 4
      %s20 = sphi 0, %s32
      %s21 = sphi 0, %s28
      %s22 = sphi 0, %s20
      %s23 = sphi 0, %s21
      %s24 = sphi 0, %s22
      %s25 = sphi 0, %s23
      %s33 = sphi 0, %s33
      %s35 = sphi 0, %s33
      %s36 = sphi 0, %s35
      %s50 = sphi 0, %s36
      %s54 = sphi 0, %s54
      %s56 = sphi 0, %s54
      %s57 = sphi 0, %s56
      %s71 = sphi 0, %s57
      %s75 = sphi 0, %s75
      %s77 = sphi 0, %s75
      %s78 = sphi 0, %s77
      %s92 = sphi 0, %s78
      %s100 = sphi 0, %s102
      %s103 = sphi 0, %s100
      %s104 = sphi 0, %s103
      %s120 = sphi 0, %s104
      %s128 = sphi 0, %s130
      %s131 = sphi 0, %s128
      %s132 = sphi 0, %s131
      %s148 = sphi 0, %s132
      %s156 = sphi 0, %s158
      %s159 = sphi 0, %s156
      %s160 = sphi 0, %s159
      %s176 = sphi 0, %s160
    $region4: #{sytlenet_forward.3} parent=1 // loop_header_branch
      %16 = sbr.rel (%p14) target = $region8
    $region5: #{sytlenet_forward.3} parent=1 // loop_body
      %s18 = ssub.s32 %s13, 1
      %s19 = ssub.s32 %s13, 2
      %s26 = sadd.s32 1, %s21
      %p27 = scmp.ge.s32.totalorder %s26, 1
      %s28 = scalar_select %p27, 0, %s26
      %s29 = sadd.s32 1, %s20
      %s30 = scalar_select %p27, %s29, %s20
      %p31 = scmp.ge.s32.totalorder %s30, 2
      %s32 = scalar_select %p31, 0, %s30
      %s34 = sadd.s32 %s33, 1
      %p37 = scmp.eq.s32.totalorder %s13, 1
      %p38 = scmp.ne.s32.totalorder %s33, %s35
      %p39 = scmp.eq.s32.totalorder %s13, 0
      %p40 = por %p38, %p39
      %p41 = scmp.ne.s32.totalorder %s33, %s35
      %p42 = scmp.eq.s32.totalorder %s18, 1
      %p43 = por %p41, %p42
      %p44 = scmp.ne.s32.totalorder %s35, %s36
      %p45 = scmp.eq.s32.totalorder %s18, 0
      %p46 = por %p44, %p45
      %p47 = scmp.ne.s32.totalorder %s35, %s36
      %p48 = scmp.eq.s32.totalorder %s19, 1
      %p49 = por %p47, %p48
      %p51 = scmp.ne.s32.totalorder %s36, %s50
      %p52 = scmp.eq.s32.totalorder %s19, 0
      %p53 = por %p51, %p52
      %s55 = sadd.s32 %s54, 1
      %p58 = scmp.eq.s32.totalorder %s13, 1
      %p59 = scmp.ne.s32.totalorder %s54, %s56
      %p60 = scmp.eq.s32.totalorder %s13, 0
      %p61 = por %p59, %p60
      %p62 = scmp.ne.s32.totalorder %s54, %s56
      %p63 = scmp.eq.s32.totalorder %s18, 1
      %p64 = por %p62, %p63
      %p65 = scmp.ne.s32.totalorder %s56, %s57
      %p66 = scmp.eq.s32.totalorder %s18, 0
      %p67 = por %p65, %p66
      %p68 = scmp.ne.s32.totalorder %s56, %s57
      %p69 = scmp.eq.s32.totalorder %s19, 1
      %p70 = por %p68, %p69
      %p72 = scmp.ne.s32.totalorder %s57, %s71
      %p73 = scmp.eq.s32.totalorder %s19, 0
      %p74 = por %p72, %p73
      %s76 = sadd.s32 %s75, 1
      %p79 = scmp.eq.s32.totalorder %s13, 1
      %p80 = scmp.ne.s32.totalorder %s75, %s77
      %p81 = scmp.eq.s32.totalorder %s13, 0
      %p82 = por %p80, %p81
      %p83 = scmp.ne.s32.totalorder %s75, %s77
      %p84 = scmp.eq.s32.totalorder %s18, 1
      %p85 = por %p83, %p84
      %p86 = scmp.ne.s32.totalorder %s77, %s78
      %p87 = scmp.eq.s32.totalorder %s18, 0
      %p88 = por %p86, %p87
      %p89 = scmp.ne.s32.totalorder %s77, %s78
      %p90 = scmp.eq.s32.totalorder %s19, 1
      %p91 = por %p89, %p90
      %p93 = scmp.ne.s32.totalorder %s78, %s92
      %p94 = scmp.eq.s32.totalorder %s19, 0
      %p95 = por %p93, %p94
      %s96 = ssub.s32 %s20, %s32
      %s97 = ssub.s32 %s21, %s28
      %s98 = sor.u32 %s96, %s97
      %p99 = scmp.eq.s32.totalorder %s98, 0
      %s101 = sadd.s32 %s100, 1
      %s102 = scalar_select %p99, %s100, %s101
      %p105 = pneg %p99
      %p106 = scmp.eq.s32.totalorder %s13, 1
      %p107 = por %p105, %p106
      %p108 = scmp.ne.s32.totalorder %s100, %s103
      %p109 = scmp.eq.s32.totalorder %s13, 0
      %p110 = por %p108, %p109
      %p111 = scmp.ne.s32.totalorder %s100, %s103
      %p112 = scmp.eq.s32.totalorder %s18, 1
      %p113 = por %p111, %p112
      %p114 = scmp.ne.s32.totalorder %s103, %s104
      %p115 = scmp.eq.s32.totalorder %s18, 0
      %p116 = por %p114, %p115
      %p117 = scmp.ne.s32.totalorder %s103, %s104
      %p118 = scmp.eq.s32.totalorder %s19, 1
      %p119 = por %p117, %p118
      %p121 = scmp.ne.s32.totalorder %s104, %s120
      %p122 = scmp.eq.s32.totalorder %s19, 0
      %p123 = por %p121, %p122
      %s124 = ssub.s32 %s20, %s32
      %s125 = ssub.s32 %s21, %s28
      %s126 = sor.u32 %s124, %s125
      %p127 = scmp.eq.s32.totalorder %s126, 0
      %s129 = sadd.s32 %s128, 1
      %s130 = scalar_select %p127, %s128, %s129
      %p133 = pneg %p127
      %p134 = scmp.eq.s32.totalorder %s13, 1
      %p135 = por %p133, %p134
      %p136 = scmp.ne.s32.totalorder %s128, %s131
      %p137 = scmp.eq.s32.totalorder %s13, 0
      %p138 = por %p136, %p137
      %p139 = scmp.ne.s32.totalorder %s128, %s131
      %p140 = scmp.eq.s32.totalorder %s18, 1
      %p141 = por %p139, %p140
      %p142 = scmp.ne.s32.totalorder %s131, %s132
      %p143 = scmp.eq.s32.totalorder %s18, 0
      %p144 = por %p142, %p143
      %p145 = scmp.ne.s32.totalorder %s131, %s132
      %p146 = scmp.eq.s32.totalorder %s19, 1
      %p147 = por %p145, %p146
      %p149 = scmp.ne.s32.totalorder %s132, %s148
      %p150 = scmp.eq.s32.totalorder %s19, 0
      %p151 = por %p149, %p150
      %s152 = ssub.s32 %s20, %s32
      %s153 = ssub.s32 %s21, %s28
      %s154 = sor.u32 %s152, %s153
      %p155 = scmp.eq.s32.totalorder %s154, 0
      %s157 = sadd.s32 %s156, 1
      %s158 = scalar_select %p155, %s156, %s157
      %p161 = pneg %p155
      %p162 = scmp.eq.s32.totalorder %s13, 1
      %p163 = por %p161, %p162
      %p164 = scmp.ne.s32.totalorder %s156, %s159
      %p165 = scmp.eq.s32.totalorder %s13, 0
      %p166 = por %p164, %p165
      %p167 = scmp.ne.s32.totalorder %s156, %s159
      %p168 = scmp.eq.s32.totalorder %s18, 1
      %p169 = por %p167, %p168
      %p170 = scmp.ne.s32.totalorder %s159, %s160
      %p171 = scmp.eq.s32.totalorder %s18, 0
      %p172 = por %p170, %p171
      %p173 = scmp.ne.s32.totalorder %s159, %s160
      %p174 = scmp.eq.s32.totalorder %s19, 1
      %p175 = por %p173, %p174
      %p177 = scmp.ne.s32.totalorder %s160, %s176
      %p178 = scmp.eq.s32.totalorder %s19, 0
      %p179 = por %p177, %p178
      %p180 = scmp.le.s32.totalorder 1, %s13
      %p181 = scmp.lt.s32.totalorder %s13, 3
      %p182 = pnand %p180, %p181
      %p183 = pneg %p182
      // Predicated region
      $region9: #{sytlenet_forward.3} parent=5 // pred_check
        _
      $region10: #{sytlenet_forward.3} parent=5 // pred_check_branch
        %185 = sbr.rel (%p182) target = $region12
      $region11: #{sytlenet_forward.3} parent=5 // pred_region
        %s186 = ssub.s32 %s13, 1
        // Predicated region
        $region13: #{sytlenet_forward.3} parent=11 // pred_check
          %p187 = pneg %p46
        $region14: #{sytlenet_forward.3} parent=11 // pred_check_branch
          %189 = sbr.rel (%p187) target = $region16
        $region15: #{sytlenet_forward.3} parent=11 // pred_region
          %191 = vsyncadd [#allocation3], 0
          %s193 = sshll.u32 %s0, 4
          %s194 = int_to_ptr.vmem [resolvable:$true] %s193
          %196 = dma.vmem_to_smem %s194, 32, [#allocation2], [#allocation3]
        $region16: #{sytlenet_forward.3} parent=11 // pred_fallthru
          _
        // Predicated region
        $region17: #{sytlenet_forward.3} parent=11 // pred_check
          %p197 = pneg %p67
        $region18: #{sytlenet_forward.3} parent=11 // pred_check_branch
          %199 = sbr.rel (%p197) target = $region20
        $region19: #{sytlenet_forward.3} parent=11 // pred_region
          %201 = vsyncadd [#allocation5], 0
          %s203 = sshll.u32 %s1, 4
          %s204 = int_to_ptr.vmem [resolvable:$true] %s203
          %206 = dma.vmem_to_smem %s204, 64, [#allocation4], [#allocation5]
        $region20: #{sytlenet_forward.3} parent=11 // pred_fallthru
          _
        // Predicated region
        $region21: #{sytlenet_forward.3} parent=11 // pred_check
          %p207 = pneg %p88
        $region22: #{sytlenet_forward.3} parent=11 // pred_check_branch
          %209 = sbr.rel (%p207) target = $region24
        $region23: #{sytlenet_forward.3} parent=11 // pred_region
          %211 = vsyncadd [#allocation5], 0
          %s213 = sshll.u32 %s2, 4
          %s214 = int_to_ptr.vmem [resolvable:$true] %s213
          %216 = dma.vmem_to_smem %s214, 64, [#allocation6], [#allocation5]
        $region24: #{sytlenet_forward.3} parent=11 // pred_fallthru
          _
      $region12: #{sytlenet_forward.3} parent=5 // pred_fallthru
        _
      %p217 = scmp.lt.s32.totalorder %s13, 2
      // Predicated region
      $region25: #{sytlenet_forward.3} parent=5 // pred_check
        %p218 = pneg %p217
      $region26: #{sytlenet_forward.3} parent=5 // pred_check_branch
        %220 = sbr.rel (%p218) target = $region28
      $region27: #{sytlenet_forward.3} parent=5 // pred_region
        // Predicated region
        $region29: #{sytlenet_forward.3} parent=27 // pred_check
          %p221 = pneg %p110
        $region30: #{sytlenet_forward.3} parent=27 // pred_check_branch
          %223 = sbr.rel (%p221) target = $region32
        $region31: #{sytlenet_forward.3} parent=27 // pred_region
          %s224 = smul.u32 2, %s21
          %p225 = scmp.lt.s32.totalorder %s20, 1
          %s226 = scalar_select %p225, %s20, 1
          %p227 = scmp.lt.s32.totalorder %s224, 1
          %s228 = scalar_select %p227, %s224, 1
          %s229 = smul.addr %s226, 2
          %s230 = sadd.s32 %s228, %s229
          %s231 = smul.addr %s230, 4
          %s232 = scalar_lea.vmem %s3, %s231
          %s233 = smul.u32 2, %s21
        $region32: #{sytlenet_forward.3} parent=27 // pred_fallthru
          _
        // Predicated region
        $region33: #{sytlenet_forward.3} parent=27 // pred_check
          %p234 = pneg %p138
        $region34: #{sytlenet_forward.3} parent=27 // pred_check_branch
          %236 = sbr.rel (%p234) target = $region36
        $region35: #{sytlenet_forward.3} parent=27 // pred_region
          %s237 = smul.u32 2, %s21
          %p238 = scmp.lt.s32.totalorder %s20, 1
          %s239 = scalar_select %p238, %s20, 1
          %p240 = scmp.lt.s32.totalorder %s237, 1
          %s241 = scalar_select %p240, %s237, 1
          %s242 = smul.addr %s239, 2
          %s243 = sadd.s32 %s241, %s242
          %s244 = smul.addr %s243, 4
          %s245 = scalar_lea.vmem %s4, %s244
          %s246 = smul.u32 2, %s21
        $region36: #{sytlenet_forward.3} parent=27 // pred_fallthru
          _
      $region28: #{sytlenet_forward.3} parent=5 // pred_fallthru
        _
      %p247 = scmp.le.s32.totalorder 1, %s13
      %p248 = scmp.lt.s32.totalorder %s13, 3
      %p249 = pnand %p247, %p248
      %p250 = pneg %p249
      // Predicated region
      $region37: #{sytlenet_forward.3} parent=5 // pred_check
        _
      $region38: #{sytlenet_forward.3} parent=5 // pred_check_branch
        %252 = sbr.rel (%p249) target = $region40
      $region39: #{sytlenet_forward.3} parent=5 // pred_region
        %s253 = ssub.s32 %s13, 1
        // Predicated region
        $region41: #{sytlenet_forward.3} parent=39 // pred_check
          %p254 = pneg %p46
        $region42: #{sytlenet_forward.3} parent=39 // pred_check_branch
          %256 = sbr.rel (%p254) target = $region44
        $region43: #{sytlenet_forward.3} parent=39 // pred_region
          %258 = dma.done [#allocation3], 32
        $region44: #{sytlenet_forward.3} parent=39 // pred_fallthru
          _
        // Predicated region
        $region45: #{sytlenet_forward.3} parent=39 // pred_check
          %p259 = pneg %p67
        $region46: #{sytlenet_forward.3} parent=39 // pred_check_branch
          %261 = sbr.rel (%p259) target = $region48
        $region47: #{sytlenet_forward.3} parent=39 // pred_region
          %263 = dma.done [#allocation5], 64
        $region48: #{sytlenet_forward.3} parent=39 // pred_fallthru
          _
        // Predicated region
        $region49: #{sytlenet_forward.3} parent=39 // pred_check
          %p264 = pneg %p88
        $region50: #{sytlenet_forward.3} parent=39 // pred_check_branch
          %266 = sbr.rel (%p264) target = $region52
        $region51: #{sytlenet_forward.3} parent=39 // pred_region
          %268 = dma.done [#allocation5], 64
        $region52: #{sytlenet_forward.3} parent=39 // pred_fallthru
          _
        %269 = sfence
        %p270 = pneg %p46
        %p271 = pneg %p43
        %p272 = pneg %p67
        %p273 = pneg %p64
        %p274 = pneg %p88
        %p275 = pneg %p85
        %s276 = smul.u32 2, %s23
        %p277 = scmp.lt.s32.totalorder %s22, 1
        %s278 = scalar_select %p277, %s22, 1
        %p279 = scmp.lt.s32.totalorder %s276, 1
        %s280 = scalar_select %p279, %s276, 1
        %s281 = smul.addr %s278, 2
        %s282 = sadd.s32 %s280, %s281
        %s283 = smul.addr %s282, 4
        %s284 = scalar_lea.vmem %s3, %s283
        %p285 = pneg %p116
        %p286 = pneg %p113
        %s287 = smul.u32 2, %s23
        %p288 = scmp.lt.s32.totalorder %s22, 1
        %s289 = scalar_select %p288, %s22, 1
        %p290 = scmp.lt.s32.totalorder %s287, 1
        %s291 = scalar_select %p290, %s287, 1
        %s292 = smul.addr %s289, 2
        %s293 = sadd.s32 %s291, %s292
        %s294 = smul.addr %s293, 4
        %s295 = scalar_lea.vmem %s4, %s294
        %p296 = pneg %p144
        %p297 = pneg %p141
        %p298 = pneg %p172
        %p299 = pneg %p169
        %s300 = smul.u32 2, %s23
        %p301 = scmp.lt.s32.totalorder %s22, 1
        %s302 = scalar_select %p301, %s22, 1
        %p303 = scmp.lt.s32.totalorder %s300, 1
        %s304 = scalar_select %p303, %s300, 1
        %s305 = smul.addr %s302, 2
        %s306 = sadd.s32 %s304, %s305
        %s307 = smul.addr %s306, 8
        %s308 = scalar_lea.vmem %s5, %s307
        %s309 = smul.u32 2, %s23
        %p310 = scmp.lt.s32.totalorder %s22, 1
        %s311 = scalar_select %p310, %s22, 1
        %p312 = scmp.lt.s32.totalorder %s309, 1
        %s313 = scalar_select %p312, %s309, 1
        %s314 = smul.addr %s311, 2
        %s315 = sadd.s32 %s313, %s314
        %s316 = smul.addr %s315, 4
        %s317 = scalar_lea.vmem %s3, %s316
        %s318 = smul.u32 2, %s23
        %s319 = smul.u32 2, %s23
        %p320 = scmp.lt.s32.totalorder %s22, 1
        %s321 = scalar_select %p320, %s22, 1
        %p322 = scmp.lt.s32.totalorder %s319, 1
        %s323 = scalar_select %p322, %s319, 1
        %s324 = smul.addr %s321, 2
        %s325 = sadd.s32 %s323, %s324
        %s326 = smul.addr %s325, 4
        %s327 = scalar_lea.vmem %s4, %s326
        %s328 = smul.u32 2, %s23
        %s329 = smul.u32 2, %s23
        %p330 = scmp.lt.s32.totalorder %s22, 1
        %s331 = scalar_select %p330, %s22, 1
        %p332 = scmp.lt.s32.totalorder %s329, 1
        %s333 = scalar_select %p332, %s329, 1
        %s334 = smul.addr %s331, 2
        %s335 = sadd.s32 %s333, %s334
        %s336 = smul.addr %s335, 8
        %s337 = scalar_lea.vmem %s5, %s336
        %s338 = smul.u32 2, %s23
        %v339 = vld [vmem:[%s317] sm:$0xff]
        %v340 = vld [vmem:[%s327] sm:$0x77]
        %s341 = smul.u32 %s22, 128
        %s342 = sld [smem:[#allocation2 + %s341]]
        %v343 = vstv %s342
        %v344 = vadd.f32 %v339, %v343
        %s345 = sld [smem:[#allocation4]]
        %v346 = vstv %s345
        %v347 = vmul.f32 %v346, %v340
        %v348 = vadd.f32 %v344, %v347
        %s349 = sld [smem:[#allocation4 + $0x80]]
        %v350 = vstv %s349
        %v351 = vmul.f32 %v350, %v340
        %v353 = vrot.slane %v351, 5
        %v354 = vrot.slane %v353, 4
        %v356 = vadd.f32 %v348, %v354
        %s357 = sld [smem:[#allocation4 + $0x100]]
        %v358 = vstv %s357
        %v359 = vmul.f32 %v358, %v340
        %v361 = vrot.slane %v359, 6
        %v362 = vrot.slane %v361, 4
        %v364 = vadd.f32 %v356, %v362
        %s365 = sadd.s32 %s341, 1
        %s366 = sld [smem:[#allocation2 + %s365]]
        %v367 = vstv %s366
        %v368 = vadd.f32 %v339, %v367
        %s369 = sld [smem:[#allocation4 + $0x1]]
        %v370 = vstv %s369
        %v371 = vmul.f32 %v370, %v340
        %v373 = vrot.slane %v371, 7
        %v375 = vadd.f32 %v368, %v373
        %s376 = sld [smem:[#allocation4 + $0x81]]
        %v377 = vstv %s376
        %v378 = vmul.f32 %v377, %v340
        %v379 = vadd.f32 %v375, %v378
        %s380 = sld [smem:[#allocation4 + $0x101]]
        %v381 = vstv %s380
        %v382 = vmul.f32 %v381, %v340
        %v384 = vrot.slane %v382, 5
        %v385 = vrot.slane %v384, 4
        %v387 = vadd.f32 %v379, %v385
        %s388 = sadd.s32 %s341, 2
        %s389 = sld [smem:[#allocation2 + %s388]]
        %v390 = vstv %s389
        %v391 = vadd.f32 %v339, %v390
        %s392 = sld [smem:[#allocation4 + $0x2]]
        %v393 = vstv %s392
        %v394 = vmul.f32 %v393, %v340
        %v396 = vrot.slane %v394, 6
        %v398 = vadd.f32 %v391, %v396
        %s399 = sld [smem:[#allocation4 + $0x82]]
        %v400 = vstv %s399
        %v401 = vmul.f32 %v400, %v340
        %v403 = vrot.slane %v401, 7
        %v405 = vadd.f32 %v398, %v403
        %s406 = sld [smem:[#allocation4 + $0x102]]
        %v407 = vstv %s406
        %v408 = vmul.f32 %v407, %v340
        %v409 = vadd.f32 %v405, %v408
        %s410 = sadd.s32 %s341, 3
        %s411 = sld [smem:[#allocation2 + %s410]]
        %v412 = vstv %s411
        %v413 = vadd.f32 %v339, %v412
        %s414 = sld [smem:[#allocation4 + $0x3]]
        %v415 = vstv %s414
        %v416 = vmul.f32 %v415, %v340
        %v418 = vrot.slane %v416, 5
        %v420 = vadd.f32 %v413, %v418
        %s421 = sld [smem:[#allocation4 + $0x83]]
        %v422 = vstv %s421
        %v423 = vmul.f32 %v422, %v340
        %v425 = vrot.slane %v423, 6
        %v427 = vadd.f32 %v420, %v425
        %s428 = sld [smem:[#allocation4 + $0x103]]
        %v429 = vstv %s428
        %v430 = vmul.f32 %v429, %v340
        %v432 = vrot.slane %v430, 7
        %v434 = vadd.f32 %v427, %v432
        %v436 = vperm.slane %v364, 0
        %v437 = vperm.slane %v364, 4
        %v441 = vperm.slane %v387, 1
        %v442 = vperm.slane %v387, 5
        %v446 = vperm.slane %v409, 2
        %v447 = vperm.slane %v409, 6
        %v451 = vperm.slane %v434, 3
        %v452 = vperm.slane %v434, 7
        %vm455 = vcmask 1040384
        %v456 = vsel %vm455, %v436, %v441
        %v457 = vsel %vm455, %v437, %v442
        %vm458 = vcmask 1041408
        %v459 = vsel %vm458, %v456, %v446
        %v460 = vsel %vm458, %v457, %v447
        %vm461 = vcmask 1042432
        %v462 = vsel %vm461, %v459, %v451
        %v463 = vsel %vm461, %v460, %v452
        %v464 = vtanh.pop %v462
        %v465 = vtanh.pop %v463
        %s466 = sld [smem:[#allocation6]]
        %v467 = vstv %s466
        %v468 = vmul.f32 %v467, %v464
        %v469 = vmul.f32 %v467, %v465
        %s470 = sld [smem:[#allocation6 + $0x80]]
        %v471 = vstv %s470
        %v472 = vmul.f32 %v471, %v464
        %v473 = vmul.f32 %v471, %v465
        %v476 = vrot.slane %v472, 1
        %v477 = vrot.slane %v473, 1
        %v480 = vadd.f32 %v468, %v476
        %v481 = vadd.f32 %v469, %v477
        %s482 = sld [smem:[#allocation6 + $0x100]]
        %v483 = vstv %s482
        %v484 = vmul.f32 %v483, %v464
        %v485 = vmul.f32 %v483, %v465
        %v488 = vrot.slane %v484, 2
        %v489 = vrot.slane %v485, 2
        %v492 = vadd.f32 %v480, %v488
        %v493 = vadd.f32 %v481, %v489
        %s494 = sld [smem:[#allocation6 + $0x180]]
        %v495 = vstv %s494
        %v496 = vmul.f32 %v495, %v464
        %v497 = vmul.f32 %v495, %v465
        %v500 = vrot.slane %v496, 3
        %v501 = vrot.slane %v497, 3
        %v504 = vadd.f32 %v492, %v500
        %v505 = vadd.f32 %v493, %v501
        %s506 = sld [smem:[#allocation6 + $0x1]]
        %v507 = vstv %s506
        %v508 = vmul.f32 %v507, %v464
        %v509 = vmul.f32 %v507, %v465
        %s510 = sld [smem:[#allocation6 + $0x81]]
        %v511 = vstv %s510
        %v512 = vmul.f32 %v511, %v464
        %v513 = vmul.f32 %v511, %v465
        %v516 = vrot.slane %v512, 1
        %v517 = vrot.slane %v513, 1
        %v520 = vadd.f32 %v508, %v516
        %v521 = vadd.f32 %v509, %v517
        %s522 = sld [smem:[#allocation6 + $0x101]]
        %v523 = vstv %s522
        %v524 = vmul.f32 %v523, %v464
        %v525 = vmul.f32 %v523, %v465
        %v528 = vrot.slane %v524, 2
        %v529 = vrot.slane %v525, 2
        %v532 = vadd.f32 %v520, %v528
        %v533 = vadd.f32 %v521, %v529
        %s534 = sld [smem:[#allocation6 + $0x181]]
        %v535 = vstv %s534
        %v536 = vmul.f32 %v535, %v464
        %v537 = vmul.f32 %v535, %v465
        %v540 = vrot.slane %v536, 3
        %v541 = vrot.slane %v537, 3
        %v544 = vadd.f32 %v532, %v540
        %v545 = vadd.f32 %v533, %v541
        %s546 = sld [smem:[#allocation6 + $0x2]]
        %v547 = vstv %s546
        %v548 = vmul.f32 %v547, %v464
        %v549 = vmul.f32 %v547, %v465
        %s550 = sld [smem:[#allocation6 + $0x82]]
        %v551 = vstv %s550
        %v552 = vmul.f32 %v551, %v464
        %v553 = vmul.f32 %v551, %v465
        %v556 = vrot.slane %v552, 1
        %v557 = vrot.slane %v553, 1
        %v560 = vadd.f32 %v548, %v556
        %v561 = vadd.f32 %v549, %v557
        %s562 = sld [smem:[#allocation6 + $0x102]]
        %v563 = vstv %s562
        %v564 = vmul.f32 %v563, %v464
        %v565 = vmul.f32 %v563, %v465
        %v568 = vrot.slane %v564, 2
        %v569 = vrot.slane %v565, 2
        %v572 = vadd.f32 %v560, %v568
        %v573 = vadd.f32 %v561, %v569
        %s574 = sld [smem:[#allocation6 + $0x182]]
        %v575 = vstv %s574
        %v576 = vmul.f32 %v575, %v464
        %v577 = vmul.f32 %v575, %v465
        %v580 = vrot.slane %v576, 3
        %v581 = vrot.slane %v577, 3
        %v584 = vadd.f32 %v572, %v580
        %v585 = vadd.f32 %v573, %v581
        %s586 = sld [smem:[#allocation6 + $0x3]]
        %v587 = vstv %s586
        %v588 = vmul.f32 %v587, %v464
        %v589 = vmul.f32 %v587, %v465
        %s590 = sld [smem:[#allocation6 + $0x83]]
        %v591 = vstv %s590
        %v592 = vmul.f32 %v591, %v464
        %v593 = vmul.f32 %v591, %v465
        %v596 = vrot.slane %v592, 1
        %v597 = vrot.slane %v593, 1
        %v600 = vadd.f32 %v588, %v596
        %v601 = vadd.f32 %v589, %v597
        %s602 = sld [smem:[#allocation6 + $0x103]]
        %v603 = vstv %s602
        %v604 = vmul.f32 %v603, %v464
        %v605 = vmul.f32 %v603, %v465
        %v608 = vrot.slane %v604, 2
        %v609 = vrot.slane %v605, 2
        %v612 = vadd.f32 %v600, %v608
        %v613 = vadd.f32 %v601, %v609
        %s614 = sld [smem:[#allocation6 + $0x183]]
        %v615 = vstv %s614
        %v616 = vmul.f32 %v615, %v464
        %v617 = vmul.f32 %v615, %v465
        %v620 = vrot.slane %v616, 3
        %v621 = vrot.slane %v617, 3
        %v624 = vadd.f32 %v612, %v620
        %v625 = vadd.f32 %v613, %v621
        %v628 = vrot.slane %v544, 7
        %v629 = vrot.slane %v545, 7
        %v634 = vrot.slane %v584, 6
        %v635 = vrot.slane %v585, 6
        %v640 = vrot.slane %v624, 5
        %v641 = vrot.slane %v625, 5
        %v644 = vsel %vm455, %v504, %v628
        %v645 = vsel %vm455, %v505, %v629
        %v646 = vsel %vm458, %v644, %v634
        %v647 = vsel %vm458, %v645, %v635
        %v648 = vsel %vm461, %v646, %v640
        %v649 = vsel %vm461, %v647, %v641
        %v652 = vrot.slane %v648, 4
        %v653 = vrot.slane %v649, 4
        %vm656 = vcmask 1043456
        %v657 = vsel %vm656, %v462, %v652
        %v658 = vsel %vm656, %v463, %v653
        %659 = vst [vmem:[%s337] sm:$0xff] %v657
        %660 = vst [vmem:[%s337 + $0x8] sm:$0xff] %v658
        %s661 = smul.u32 2, %s23
        %p662 = scmp.lt.s32.totalorder %s22, 1
        %s663 = scalar_select %p662, %s22, 1
        %p664 = scmp.lt.s32.totalorder %s661, 1
        %s665 = scalar_select %p664, %s661, 1
        %s666 = smul.addr %s663, 2
        %s667 = sadd.s32 %s665, %s666
        %s668 = smul.addr %s667, 8
        %s669 = scalar_lea.vmem %s5, %s668
        // Predicated region
        $region53: #{sytlenet_forward.3} parent=39 // pred_check
          %p670 = pneg %p169
        $region54: #{sytlenet_forward.3} parent=39 // pred_check_branch
          %672 = sbr.rel (%p670) target = $region56
        $region55: #{sytlenet_forward.3} parent=39 // pred_region
          %s673 = smul.u32 2, %s23
        $region56: #{sytlenet_forward.3} parent=39 // pred_fallthru
          _
      $region40: #{sytlenet_forward.3} parent=5 // pred_fallthru
        _
      %p674 = scmp.le.s32.totalorder 2, %s13
      // Predicated region
      $region57: #{sytlenet_forward.3} parent=5 // pred_check
        %p675 = pneg %p674
      $region58: #{sytlenet_forward.3} parent=5 // pred_check_branch
        %677 = sbr.rel (%p675) target = $region60
      $region59: #{sytlenet_forward.3} parent=5 // pred_region
        %s678 = ssub.s32 %s13, 2
        // Predicated region
        $region61: #{sytlenet_forward.3} parent=59 // pred_check
          %p679 = pneg %p175
        $region62: #{sytlenet_forward.3} parent=59 // pred_check_branch
          %681 = sbr.rel (%p679) target = $region64
        $region63: #{sytlenet_forward.3} parent=59 // pred_region
          %s682 = smul.u32 2, %s25
          %p683 = scmp.lt.s32.totalorder %s24, 1
          %s684 = scalar_select %p683, %s24, 1
          %p685 = scmp.lt.s32.totalorder %s682, 1
          %s686 = scalar_select %p685, %s682, 1
          %s687 = smul.addr %s684, 2
          %s688 = sadd.s32 %s686, %s687
          %s689 = smul.addr %s688, 8
          %s690 = scalar_lea.vmem %s5, %s689
        $region64: #{sytlenet_forward.3} parent=59 // pred_fallthru
          _
      $region60: #{sytlenet_forward.3} parent=5 // pred_fallthru
        _
    $region6: #{sytlenet_forward.3} parent=1 // loop_footer
      %s17 = sadd.s32 1, %s13
    $region7: #{sytlenet_forward.3} parent=1 // loop_footer_branch
      %12 = sbr.rel target = $region3
    $region8: #{sytlenet_forward.3} parent=1 // loop_exit
      _
    %691 = vsyncpa [#allocation3], 1
    %s692 = scalar_lea.sflag [#allocation3], 1
    %693 = vsyncpa %s692, 1
    %694 = vsyncpa [#allocation5], 1

// kernel: sytlenet_forward.2
$region0: #{sytlenet_forward.2}
  #allocation0 [shape = 'u32[]', space=smem, size = 0x4, offset = 0x4, fixed_abs, tag = 'smem constant byte address 0x4 - core index']
  #allocation1 [shape = 'u32[72,128]{1,0:T(1,128)}', space=vmem, size = 0x9000, scoped, tag = 'internal scratch']
  #allocation2 [shape = 'f32[2,128]{1,0:T(2,128)}', space=vmem, size = 0x400, scoped, tag = 'scratch operand']
  %s0 = inlined_call_operand.vmem [shape: bf16[2,256], index: 0, kind: input, shape index: {}]
  %s1 = inlined_call_operand.hbm [shape: bf16[256,1024], index: 1, kind: input, shape index: {}]
  %s2 = inlined_call_operand.vmem [shape: f32[1,1024], index: 2, kind: input, shape index: {}]
  %s3 = inlined_call_operand.hbm [shape: bf16[1024,128], index: 3, kind: input, shape index: {}]
  %s4 = inlined_call_operand.vmem [shape: f32[1,128], index: 4, kind: input, shape index: {}]
  %s5 = inlined_call_operand.vmem [shape: f32[1,128], index: 5, kind: input, shape index: {}]
  %s6 = inlined_call_operand.vmem [shape: f32[1,128], index: 6, kind: input, shape index: {}]
  %s7 = inlined_call_operand.vmem [shape: f32[2,128], index: 7, kind: output, shape index: {}]
  %s8 = sld [smem:[#allocation0]]
  $region77: #{sytlenet_forward.2} parent=0
    _
  %s10 = ssub.s32 1, %s8
  %s11 = scalar_select 0, %s10, %s8
  $region1: #{sytlenet_forward.2} parent=0
    #allocation3 [shape = 'u8[524288]{0}', space=vmem, size = 0x80000, scoped, tag = 'input window, operand 1']
    #allocation4 [shape = 's32[2]{0}', space=sflag, size = 0x8, scoped, tag = 'scoped memory for sytlenet_forward.2']
    #allocation5 [shape = 'u8[262144]{0}', space=vmem, size = 0x40000, scoped, tag = 'input window, operand 3']
    #allocation6 [shape = 's32[2]{0}', space=sflag, size = 0x8, scoped, tag = 'scoped memory for sytlenet_forward.2']
    %12 = vsyncpa [#allocation4], 0
    %s13 = scalar_lea.sflag [#allocation4], 1
    %14 = vsyncpa %s13, 0
    %15 = vsyncpa [#allocation6], 0
    %s16 = scalar_lea.sflag [#allocation6], 1
    %17 = vsyncpa %s16, 0
    loop: start=0, step=1, limit=4
    $region2: #{sytlenet_forward.2} parent=1 // loop_pre_header
      _
    $region3: #{sytlenet_forward.2} parent=1 // loop_header
      %s19 = sphi 0, %s23
      %p20 = scmp.ge.s32.totalorder %s19, 4
      %s27 = sphi 0, %s27
      %s29 = sphi 0, %s27
      %s30 = sphi 0, %s29
      %s44 = sphi 0, %s30
      %s50 = sphi 0, %s52
      %s53 = sphi 0, %s50
      %s54 = sphi 0, %s53
      %s70 = sphi 0, %s54
      %s76 = sphi 0, %s78
      %s79 = sphi 0, %s76
      %s80 = sphi 0, %s79
      %s96 = sphi 0, %s80
      %s102 = sphi 0, %s104
      %s105 = sphi 0, %s102
      %s106 = sphi 0, %s105
      %s122 = sphi 0, %s106
      %s126 = sphi 0, %s126
      %s128 = sphi 0, %s126
      %s129 = sphi 0, %s128
      %s143 = sphi 0, %s129
      %s147 = sphi 0, %s147
      %s149 = sphi 0, %s147
      %s150 = sphi 0, %s149
      %s164 = sphi 0, %s150
      %s168 = sphi 0, %s168
      %s170 = sphi 0, %s168
      %s171 = sphi 0, %s170
      %s185 = sphi 0, %s171
      %s189 = sphi 0, %s189
      %s191 = sphi 0, %s189
      %s192 = sphi 0, %s191
      %s206 = sphi 0, %s192
    $region4: #{sytlenet_forward.2} parent=1 // loop_header_branch
      %22 = sbr.rel (%p20) target = $region8
    $region5: #{sytlenet_forward.2} parent=1 // loop_body
      %s24 = ssub.s32 %s19, 1
      %s25 = ssub.s32 %s19, 2
      %s26 = sadd.s32 %s19, 1
      %s28 = sadd.s32 %s27, 1
      %p31 = scmp.eq.s32.totalorder %s19, 1
      %p32 = scmp.ne.s32.totalorder %s27, %s29
      %p33 = scmp.eq.s32.totalorder %s19, 0
      %p34 = por %p32, %p33
      %p35 = scmp.ne.s32.totalorder %s27, %s29
      %p36 = scmp.eq.s32.totalorder %s24, 1
      %p37 = por %p35, %p36
      %p38 = scmp.ne.s32.totalorder %s29, %s30
      %p39 = scmp.eq.s32.totalorder %s24, 0
      %p40 = por %p38, %p39
      %p41 = scmp.ne.s32.totalorder %s29, %s30
      %p42 = scmp.eq.s32.totalorder %s25, 1
      %p43 = por %p41, %p42
      %p45 = scmp.ne.s32.totalorder %s30, %s44
      %p46 = scmp.eq.s32.totalorder %s25, 0
      %p47 = por %p45, %p46
      %s48 = ssub.s32 %s19, %s26
      %p49 = scmp.eq.s32.totalorder %s48, 0
      %s51 = sadd.s32 %s50, 1
      %s52 = scalar_select %p49, %s50, %s51
      %p55 = pneg %p49
      %p56 = scmp.eq.s32.totalorder %s19, 1
      %p57 = por %p55, %p56
      %p58 = scmp.ne.s32.totalorder %s50, %s53
      %p59 = scmp.eq.s32.totalorder %s19, 0
      %p60 = por %p58, %p59
      %p61 = scmp.ne.s32.totalorder %s50, %s53
      %p62 = scmp.eq.s32.totalorder %s24, 1
      %p63 = por %p61, %p62
      %p64 = scmp.ne.s32.totalorder %s53, %s54
      %p65 = scmp.eq.s32.totalorder %s24, 0
      %p66 = por %p64, %p65
      %p67 = scmp.ne.s32.totalorder %s53, %s54
      %p68 = scmp.eq.s32.totalorder %s25, 1
      %p69 = por %p67, %p68
      %p71 = scmp.ne.s32.totalorder %s54, %s70
      %p72 = scmp.eq.s32.totalorder %s25, 0
      %p73 = por %p71, %p72
      %s74 = ssub.s32 %s19, %s26
      %p75 = scmp.eq.s32.totalorder %s74, 0
      %s77 = sadd.s32 %s76, 1
      %s78 = scalar_select %p75, %s76, %s77
      %p81 = pneg %p75
      %p82 = scmp.eq.s32.totalorder %s19, 1
      %p83 = por %p81, %p82
      %p84 = scmp.ne.s32.totalorder %s76, %s79
      %p85 = scmp.eq.s32.totalorder %s19, 0
      %p86 = por %p84, %p85
      %p87 = scmp.ne.s32.totalorder %s76, %s79
      %p88 = scmp.eq.s32.totalorder %s24, 1
      %p89 = por %p87, %p88
      %p90 = scmp.ne.s32.totalorder %s79, %s80
      %p91 = scmp.eq.s32.totalorder %s24, 0
      %p92 = por %p90, %p91
      %p93 = scmp.ne.s32.totalorder %s79, %s80
      %p94 = scmp.eq.s32.totalorder %s25, 1
      %p95 = por %p93, %p94
      %p97 = scmp.ne.s32.totalorder %s80, %s96
      %p98 = scmp.eq.s32.totalorder %s25, 0
      %p99 = por %p97, %p98
      %s100 = ssub.s32 %s19, %s26
      %p101 = scmp.eq.s32.totalorder %s100, 0
      %s103 = sadd.s32 %s102, 1
      %s104 = scalar_select %p101, %s102, %s103
      %p107 = pneg %p101
      %p108 = scmp.eq.s32.totalorder %s19, 1
      %p109 = por %p107, %p108
      %p110 = scmp.ne.s32.totalorder %s102, %s105
      %p111 = scmp.eq.s32.totalorder %s19, 0
      %p112 = por %p110, %p111
      %p113 = scmp.ne.s32.totalorder %s102, %s105
      %p114 = scmp.eq.s32.totalorder %s24, 1
      %p115 = por %p113, %p114
      %p116 = scmp.ne.s32.totalorder %s105, %s106
      %p117 = scmp.eq.s32.totalorder %s24, 0
      %p118 = por %p116, %p117
      %p119 = scmp.ne.s32.totalorder %s105, %s106
      %p120 = scmp.eq.s32.totalorder %s25, 1
      %p121 = por %p119, %p120
      %p123 = scmp.ne.s32.totalorder %s106, %s122
      %p124 = scmp.eq.s32.totalorder %s25, 0
      %p125 = por %p123, %p124
      %s127 = sadd.s32 %s126, 1
      %p130 = scmp.eq.s32.totalorder %s19, 1
      %p131 = scmp.ne.s32.totalorder %s126, %s128
      %p132 = scmp.eq.s32.totalorder %s19, 0
      %p133 = por %p131, %p132
      %p134 = scmp.ne.s32.totalorder %s126, %s128
      %p135 = scmp.eq.s32.totalorder %s24, 1
      %p136 = por %p134, %p135
      %p137 = scmp.ne.s32.totalorder %s128, %s129
      %p138 = scmp.eq.s32.totalorder %s24, 0
      %p139 = por %p137, %p138
      %p140 = scmp.ne.s32.totalorder %s128, %s129
      %p141 = scmp.eq.s32.totalorder %s25, 1
      %p142 = por %p140, %p141
      %p144 = scmp.ne.s32.totalorder %s129, %s143
      %p145 = scmp.eq.s32.totalorder %s25, 0
      %p146 = por %p144, %p145
      %s148 = sadd.s32 %s147, 1
      %p151 = scmp.eq.s32.totalorder %s19, 1
      %p152 = scmp.ne.s32.totalorder %s147, %s149
      %p153 = scmp.eq.s32.totalorder %s19, 0
      %p154 = por %p152, %p153
      %p155 = scmp.ne.s32.totalorder %s147, %s149
      %p156 = scmp.eq.s32.totalorder %s24, 1
      %p157 = por %p155, %p156
      %p158 = scmp.ne.s32.totalorder %s149, %s150
      %p159 = scmp.eq.s32.totalorder %s24, 0
      %p160 = por %p158, %p159
      %p161 = scmp.ne.s32.totalorder %s149, %s150
      %p162 = scmp.eq.s32.totalorder %s25, 1
      %p163 = por %p161, %p162
      %p165 = scmp.ne.s32.totalorder %s150, %s164
      %p166 = scmp.eq.s32.totalorder %s25, 0
      %p167 = por %p165, %p166
      %s169 = sadd.s32 %s168, 1
      %p172 = scmp.eq.s32.totalorder %s19, 1
      %p173 = scmp.ne.s32.totalorder %s168, %s170
      %p174 = scmp.eq.s32.totalorder %s19, 0
      %p175 = por %p173, %p174
      %p176 = scmp.ne.s32.totalorder %s168, %s170
      %p177 = scmp.eq.s32.totalorder %s24, 1
      %p178 = por %p176, %p177
      %p179 = scmp.ne.s32.totalorder %s170, %s171
      %p180 = scmp.eq.s32.totalorder %s24, 0
      %p181 = por %p179, %p180
      %p182 = scmp.ne.s32.totalorder %s170, %s171
      %p183 = scmp.eq.s32.totalorder %s25, 1
      %p184 = por %p182, %p183
      %p186 = scmp.ne.s32.totalorder %s171, %s185
      %p187 = scmp.eq.s32.totalorder %s25, 0
      %p188 = por %p186, %p187
      %s190 = sadd.s32 %s189, 1
      %p193 = scmp.eq.s32.totalorder %s19, 1
      %p194 = scmp.ne.s32.totalorder %s189, %s191
      %p195 = scmp.eq.s32.totalorder %s19, 0
      %p196 = por %p194, %p195
      %p197 = scmp.ne.s32.totalorder %s189, %s191
      %p198 = scmp.eq.s32.totalorder %s24, 1
      %p199 = por %p197, %p198
      %p200 = scmp.ne.s32.totalorder %s191, %s192
      %p201 = scmp.eq.s32.totalorder %s24, 0
      %p202 = por %p200, %p201
      %p203 = scmp.ne.s32.totalorder %s191, %s192
      %p204 = scmp.eq.s32.totalorder %s25, 1
      %p205 = por %p203, %p204
      %p207 = scmp.ne.s32.totalorder %s192, %s206
      %p208 = scmp.eq.s32.totalorder %s25, 0
      %p209 = por %p207, %p208
      %p210 = scmp.le.s32.totalorder 1, %s19
      %p211 = scmp.lt.s32.totalorder %s19, 3
      %p212 = pnand %p210, %p211
      %p213 = pneg %p212
      // Predicated region
      $region9: #{sytlenet_forward.2} parent=5 // pred_check
        _
      $region10: #{sytlenet_forward.2} parent=5 // pred_check_branch
        %215 = sbr.rel (%p212) target = $region12
      $region11: #{sytlenet_forward.2} parent=5 // pred_region
        %s216 = ssub.s32 %s19, 1
        // Predicated region
        $region13: #{sytlenet_forward.2} parent=11 // pred_check
          %p217 = pneg %p40
        $region14: #{sytlenet_forward.2} parent=11 // pred_check_branch
          %219 = sbr.rel (%p217) target = $region16
        $region15: #{sytlenet_forward.2} parent=11 // pred_region
          _
        $region16: #{sytlenet_forward.2} parent=11 // pred_fallthru
          _
        // Predicated region
        $region17: #{sytlenet_forward.2} parent=11 // pred_check
          %p220 = pneg %p139
        $region18: #{sytlenet_forward.2} parent=11 // pred_check_branch
          %222 = sbr.rel (%p220) target = $region20
        $region19: #{sytlenet_forward.2} parent=11 // pred_region
          _
        $region20: #{sytlenet_forward.2} parent=11 // pred_fallthru
          _
        // Predicated region
        $region21: #{sytlenet_forward.2} parent=11 // pred_check
          %p223 = pneg %p160
        $region22: #{sytlenet_forward.2} parent=11 // pred_check_branch
          %225 = sbr.rel (%p223) target = $region24
        $region23: #{sytlenet_forward.2} parent=11 // pred_region
          _
        $region24: #{sytlenet_forward.2} parent=11 // pred_fallthru
          _
        // Predicated region
        $region25: #{sytlenet_forward.2} parent=11 // pred_check
          %p226 = pneg %p181
        $region26: #{sytlenet_forward.2} parent=11 // pred_check_branch
          %228 = sbr.rel (%p226) target = $region28
        $region27: #{sytlenet_forward.2} parent=11 // pred_region
          _
        $region28: #{sytlenet_forward.2} parent=11 // pred_fallthru
          _
      $region12: #{sytlenet_forward.2} parent=5 // pred_fallthru
        _
      %p229 = scmp.lt.s32.totalorder %s19, 2
      // Predicated region
      $region29: #{sytlenet_forward.2} parent=5 // pred_check
        %p230 = pneg %p229
      $region30: #{sytlenet_forward.2} parent=5 // pred_check_branch
        %232 = sbr.rel (%p230) target = $region32
      $region31: #{sytlenet_forward.2} parent=5 // pred_region
        // Predicated region
        $region33: #{sytlenet_forward.2} parent=31 // pred_check
          %p233 = pneg %p60
        $region34: #{sytlenet_forward.2} parent=31 // pred_check_branch
          %235 = sbr.rel (%p233) target = $region36
        $region35: #{sytlenet_forward.2} parent=31 // pred_region
          %s236 = sand.u32 %s50, 1
          %s237 = scalar_lea.sflag [#allocation4], %s236
          %s238 = sand.u32 %s50, 1
          %s239 = smul.addr %s238, 512
          %s240 = scalar_lea.vmem [#allocation3], %s239
          %s241 = smul.u32 4, %s19
          %243 = vsyncadd %s237, 0
          %s244 = smul.addr %s241, 4
          %s245 = scalar_lea.hbm %s1, %s244
          %s246 = sshll.u32 %s245, 4
          %s247 = int_to_ptr.hbm [resolvable:$true] %s246
          %s248 = sshll.u32 %s240, 4
          %s249 = int_to_ptr.vmem [resolvable:$true] %s248
          %254 = dma.hbm_to_vmem [thread:$0]  %s247, 8192, %s249, %s237, 512, 256, 16
        $region36: #{sytlenet_forward.2} parent=31 // pred_fallthru
          _
        // Predicated region
        $region37: #{sytlenet_forward.2} parent=31 // pred_check
          %p255 = pneg %p86
        $region38: #{sytlenet_forward.2} parent=31 // pred_check_branch
          %257 = sbr.rel (%p255) target = $region40
        $region39: #{sytlenet_forward.2} parent=31 // pred_region
          %s258 = smul.u32 4, %s19
          %p259 = scmp.lt.s32.totalorder %s258, 7
          %s260 = scalar_select %p259, %s258, 7
          %s261 = scalar_lea.vmem %s2, %s260
          %s262 = smul.u32 4, %s19
        $region40: #{sytlenet_forward.2} parent=31 // pred_fallthru
          _
        // Predicated region
        $region41: #{sytlenet_forward.2} parent=31 // pred_check
          %p263 = pneg %p112
        $region42: #{sytlenet_forward.2} parent=31 // pred_check_branch
          %265 = sbr.rel (%p263) target = $region44
        $region43: #{sytlenet_forward.2} parent=31 // pred_region
          %s266 = sand.u32 %s102, 1
          %s267 = scalar_lea.sflag [#allocation6], %s266
          %s268 = sand.u32 %s102, 1
          %s269 = smul.addr %s268, 256
          %s270 = scalar_lea.vmem [#allocation5], %s269
          %s271 = smul.u32 64, %s19
          %273 = vsyncadd %s267, 0
          %s274 = smul.addr %s271, 4
          %s275 = scalar_lea.hbm %s3, %s274
          %s276 = sshll.u32 %s275, 4
          %s277 = int_to_ptr.hbm [resolvable:$true] %s276
          %s278 = sshll.u32 %s270, 4
          %s279 = int_to_ptr.vmem [resolvable:$true] %s278
          %284 = dma.hbm_to_vmem [thread:$0]  %s277, 4096, %s279, %s267, 64, 64, 4
        $region44: #{sytlenet_forward.2} parent=31 // pred_fallthru
          _
      $region32: #{sytlenet_forward.2} parent=5 // pred_fallthru
        _
      %p285 = scmp.le.s32.totalorder 1, %s19
      %p286 = scmp.lt.s32.totalorder %s19, 3
      %p287 = pnand %p285, %p286
      %p288 = pneg %p287
      // Predicated region
      $region45: #{sytlenet_forward.2} parent=5 // pred_check
        _
      $region46: #{sytlenet_forward.2} parent=5 // pred_check_branch
        %290 = sbr.rel (%p287) target = $region48
      $region47: #{sytlenet_forward.2} parent=5 // pred_region
        %s291 = ssub.s32 %s19, 1
        %s292 = sand.u32 %s53, 1
        %s293 = scalar_lea.sflag [#allocation4], %s292
        %s294 = sand.u32 %s53, 1
        %s295 = smul.addr %s294, 512
        %s296 = scalar_lea.vmem [#allocation3], %s295
        // Predicated region
        $region49: #{sytlenet_forward.2} parent=47 // pred_check
          %p297 = pneg %p66
        $region50: #{sytlenet_forward.2} parent=47 // pred_check_branch
          %299 = sbr.rel (%p297) target = $region52
        $region51: #{sytlenet_forward.2} parent=47 // pred_region
          %301 = dma.done %s293, 8192
        $region52: #{sytlenet_forward.2} parent=47 // pred_fallthru
          _
        %s302 = sand.u32 %s105, 1
        %s303 = scalar_lea.sflag [#allocation6], %s302
        %s304 = sand.u32 %s105, 1
        %s305 = smul.addr %s304, 256
        %s306 = scalar_lea.vmem [#allocation5], %s305
        // Predicated region
        $region53: #{sytlenet_forward.2} parent=47 // pred_check
          %p307 = pneg %p118
        $region54: #{sytlenet_forward.2} parent=47 // pred_check_branch
          %309 = sbr.rel (%p307) target = $region56
        $region55: #{sytlenet_forward.2} parent=47 // pred_region
          %311 = dma.done %s303, 4096
        $region56: #{sytlenet_forward.2} parent=47 // pred_fallthru
          _
        %p312 = pneg %p40
        %p313 = pneg %p37
        %s314 = sand.u32 %s53, 1
        %s315 = scalar_lea.sflag [#allocation4], %s314
        %s316 = sand.u32 %s53, 1
        %s317 = smul.addr %s316, 512
        %s318 = scalar_lea.vmem [#allocation3], %s317
        %p319 = pneg %p66
        %p320 = pneg %p63
        %s321 = smul.u32 4, %s24
        %p322 = scmp.lt.s32.totalorder %s321, 7
        %s323 = scalar_select %p322, %s321, 7
        %s324 = scalar_lea.vmem %s2, %s323
        %p325 = pneg %p92
        %p326 = pneg %p89
        %s327 = sand.u32 %s105, 1
        %s328 = scalar_lea.sflag [#allocation6], %s327
        %s329 = sand.u32 %s105, 1
        %s330 = smul.addr %s329, 256
        %s331 = scalar_lea.vmem [#allocation5], %s330
        %p332 = pneg %p118
        %p333 = pneg %p115
        %p334 = pneg %p139
        %p335 = pneg %p136
        %p336 = pneg %p160
        %p337 = pneg %p157
        %p338 = pneg %p181
        %p339 = pneg %p178
        %p340 = pneg %p202
        %p341 = pneg %p199
        %s342 = smul.u32 4, %s24
        %s343 = smul.u32 4, %s24
        %p344 = scmp.lt.s32.totalorder %s343, 7
        %s345 = scalar_select %p344, %s343, 7
        %s346 = scalar_lea.vmem %s2, %s345
        %s347 = smul.u32 4, %s24
        %s348 = smul.u32 64, %s24
        %p349 = scmp.eq.s32.totalorder %s24, 0
        // Predicated region
        $region57: #{sytlenet_forward.2} parent=47 // pred_check
          %p350 = pneg %p349
        $region58: #{sytlenet_forward.2} parent=47 // pred_check_branch
          %352 = sbr.rel (%p350) target = $region60
        $region59: #{sytlenet_forward.2} parent=47 // pred_region
          %353 = vst [vmem:[#allocation2] sm:$0x3] 0.0
        $region60: #{sytlenet_forward.2} parent=47 // pred_fallthru
          _
        %v354 = vld [vmem:[%s0] sm:$0x3]
        %v355 = vld [vmem:[%s296] sm:$0xff]
        %v356 = vld [vmem:[%s296 + $0x8] sm:$0xff]
        %v357 = vld [vmem:[%s296 + $0x10] sm:$0xff]
        %v358 = vld [vmem:[%s296 + $0x18] sm:$0xff]
        %v359 = vld [vmem:[%s296 + $0x20] sm:$0xff]
        %v360 = vld [vmem:[%s296 + $0x28] sm:$0xff]
        %v361 = vld [vmem:[%s296 + $0x30] sm:$0xff]
        %v362 = vld [vmem:[%s296 + $0x38] sm:$0xff]
        %v363 = vld [vmem:[%s296 + $0x40] sm:$0xff]
        %v364 = vld [vmem:[%s296 + $0x48] sm:$0xff]
        %v365 = vld [vmem:[%s296 + $0x50] sm:$0xff]
        %v366 = vld [vmem:[%s296 + $0x58] sm:$0xff]
        %v367 = vld [vmem:[%s296 + $0x60] sm:$0xff]
        %v368 = vld [vmem:[%s296 + $0x68] sm:$0xff]
        %v369 = vld [vmem:[%s296 + $0x70] sm:$0xff]
        %v370 = vld [vmem:[%s296 + $0x78] sm:$0xff]
        %v371 = vld [vmem:[%s296 + $0x80] sm:$0xff]
        %v372 = vld [vmem:[%s296 + $0x88] sm:$0xff]
        %v373 = vld [vmem:[%s296 + $0x90] sm:$0xff]
        %v374 = vld [vmem:[%s296 + $0x98] sm:$0xff]
        %v375 = vld [vmem:[%s296 + $0xa0] sm:$0xff]
        %v376 = vld [vmem:[%s296 + $0xa8] sm:$0xff]
        %v377 = vld [vmem:[%s296 + $0xb0] sm:$0xff]
        %v378 = vld [vmem:[%s296 + $0xb8] sm:$0xff]
        %v379 = vld [vmem:[%s296 + $0xc0] sm:$0xff]
        %v380 = vld [vmem:[%s296 + $0xc8] sm:$0xff]
        %v381 = vld [vmem:[%s296 + $0xd0] sm:$0xff]
        %v382 = vld [vmem:[%s296 + $0xd8] sm:$0xff]
        %v383 = vld [vmem:[%s296 + $0xe0] sm:$0xff]
        %v384 = vld [vmem:[%s296 + $0xe8] sm:$0xff]
        %v385 = vld [vmem:[%s296 + $0xf0] sm:$0xff]
        %v386 = vld [vmem:[%s296 + $0xf8] sm:$0xff]
        %v387 = vld [vmem:[%s296 + $0x100] sm:$0xff]
        %v388 = vld [vmem:[%s296 + $0x108] sm:$0xff]
        %v389 = vld [vmem:[%s296 + $0x110] sm:$0xff]
        %v390 = vld [vmem:[%s296 + $0x118] sm:$0xff]
        %v391 = vld [vmem:[%s296 + $0x120] sm:$0xff]
        %v392 = vld [vmem:[%s296 + $0x128] sm:$0xff]
        %v393 = vld [vmem:[%s296 + $0x130] sm:$0xff]
        %v394 = vld [vmem:[%s296 + $0x138] sm:$0xff]
        %v395 = vld [vmem:[%s296 + $0x140] sm:$0xff]
        %v396 = vld [vmem:[%s296 + $0x148] sm:$0xff]
        %v397 = vld [vmem:[%s296 + $0x150] sm:$0xff]
        %v398 = vld [vmem:[%s296 + $0x158] sm:$0xff]
        %v399 = vld [vmem:[%s296 + $0x160] sm:$0xff]
        %v400 = vld [vmem:[%s296 + $0x168] sm:$0xff]
        %v401 = vld [vmem:[%s296 + $0x170] sm:$0xff]
        %v402 = vld [vmem:[%s296 + $0x178] sm:$0xff]
        %v403 = vld [vmem:[%s296 + $0x180] sm:$0xff]
        %v404 = vld [vmem:[%s296 + $0x188] sm:$0xff]
        %v405 = vld [vmem:[%s296 + $0x190] sm:$0xff]
        %v406 = vld [vmem:[%s296 + $0x198] sm:$0xff]
        %v407 = vld [vmem:[%s296 + $0x1a0] sm:$0xff]
        %v408 = vld [vmem:[%s296 + $0x1a8] sm:$0xff]
        %v409 = vld [vmem:[%s296 + $0x1b0] sm:$0xff]
        %v410 = vld [vmem:[%s296 + $0x1b8] sm:$0xff]
        %v411 = vld [vmem:[%s296 + $0x1c0] sm:$0xff]
        %v412 = vld [vmem:[%s296 + $0x1c8] sm:$0xff]
        %v413 = vld [vmem:[%s296 + $0x1d0] sm:$0xff]
        %v414 = vld [vmem:[%s296 + $0x1d8] sm:$0xff]
        %v415 = vld [vmem:[%s296 + $0x1e0] sm:$0xff]
        %v416 = vld [vmem:[%s296 + $0x1e8] sm:$0xff]
        %v417 = vld [vmem:[%s296 + $0x1f0] sm:$0xff]
        %v418 = vld [vmem:[%s296 + $0x1f8] sm:$0xff]
        %v419 = vld [vmem:[%s346] sm:$0xf]
        %v421 = vperm.slane %v419, 0
        %v422 = vperm.slane %v419, 1
        %v423 = vperm.slane %v419, 2
        %v424 = vperm.slane %v419, 3
        %430 = vst [vmem:[#allocation1] ss:$9 sm:$0xff] %v354
        %v431 = vld [vmem:[#allocation1] sm:$0xff]
        %v432 = vld [vmem:[#allocation1 + $0x9] sm:$0xff]
        %v499 = vunpack.c.l.b16 %v355
        %v500 = vunpack.c.h.b16 %v355
        %v501 = vunpack.c.l.b16 %v356
        %v502 = vunpack.c.h.b16 %v356
        %v503 = vunpack.c.l.b16 %v357
        %v504 = vunpack.c.h.b16 %v357
        %v505 = vunpack.c.l.b16 %v358
        %v506 = vunpack.c.h.b16 %v358
        %v507 = vunpack.c.l.b16 %v359
        %v508 = vunpack.c.h.b16 %v359
        %v509 = vunpack.c.l.b16 %v360
        %v510 = vunpack.c.h.b16 %v360
        %v511 = vunpack.c.l.b16 %v361
        %v512 = vunpack.c.h.b16 %v361
        %v513 = vunpack.c.l.b16 %v362
        %v514 = vunpack.c.h.b16 %v362
        %v515 = vunpack.c.l.b16 %v363
        %v516 = vunpack.c.h.b16 %v363
        %v517 = vunpack.c.l.b16 %v364
        %v518 = vunpack.c.h.b16 %v364
        %v519 = vunpack.c.l.b16 %v365
        %v520 = vunpack.c.h.b16 %v365
        %v521 = vunpack.c.l.b16 %v366
        %v522 = vunpack.c.h.b16 %v366
        %v523 = vunpack.c.l.b16 %v367
        %v524 = vunpack.c.h.b16 %v367
        %v525 = vunpack.c.l.b16 %v368
        %v526 = vunpack.c.h.b16 %v368
        %v527 = vunpack.c.l.b16 %v369
        %v528 = vunpack.c.h.b16 %v369
        %v529 = vunpack.c.l.b16 %v370
        %v530 = vunpack.c.h.b16 %v370
        %v531 = vunpack.c.l.b16 %v371
        %v532 = vunpack.c.h.b16 %v371
        %v533 = vunpack.c.l.b16 %v372
        %v534 = vunpack.c.h.b16 %v372
        %v535 = vunpack.c.l.b16 %v373
        %v536 = vunpack.c.h.b16 %v373
        %v537 = vunpack.c.l.b16 %v374
        %v538 = vunpack.c.h.b16 %v374
        %v539 = vunpack.c.l.b16 %v375
        %v540 = vunpack.c.h.b16 %v375
        %v541 = vunpack.c.l.b16 %v376
        %v542 = vunpack.c.h.b16 %v376
        %v543 = vunpack.c.l.b16 %v377
        %v544 = vunpack.c.h.b16 %v377
        %v545 = vunpack.c.l.b16 %v378
        %v546 = vunpack.c.h.b16 %v378
        %v547 = vunpack.c.l.b16 %v379
        %v548 = vunpack.c.h.b16 %v379
        %v549 = vunpack.c.l.b16 %v380
        %v550 = vunpack.c.h.b16 %v380
        %v551 = vunpack.c.l.b16 %v381
        %v552 = vunpack.c.h.b16 %v381
        %v553 = vunpack.c.l.b16 %v382
        %v554 = vunpack.c.h.b16 %v382
        %v555 = vunpack.c.l.b16 %v383
        %v556 = vunpack.c.h.b16 %v383
        %v557 = vunpack.c.l.b16 %v384
        %v558 = vunpack.c.h.b16 %v384
        %v559 = vunpack.c.l.b16 %v385
        %v560 = vunpack.c.h.b16 %v385
        %v561 = vunpack.c.l.b16 %v386
        %v562 = vunpack.c.h.b16 %v386
        %v563 = vunpack.c.l.b16 %v387
        %v564 = vunpack.c.h.b16 %v387
        %v565 = vunpack.c.l.b16 %v388
        %v566 = vunpack.c.h.b16 %v388
        %v567 = vunpack.c.l.b16 %v389
        %v568 = vunpack.c.h.b16 %v389
        %v569 = vunpack.c.l.b16 %v390
        %v570 = vunpack.c.h.b16 %v390
        %v571 = vunpack.c.l.b16 %v391
        %v572 = vunpack.c.h.b16 %v391
        %v573 = vunpack.c.l.b16 %v392
        %v574 = vunpack.c.h.b16 %v392
        %v575 = vunpack.c.l.b16 %v393
        %v576 = vunpack.c.h.b16 %v393
        %v577 = vunpack.c.l.b16 %v394
        %v578 = vunpack.c.h.b16 %v394
        %v579 = vunpack.c.l.b16 %v395
        %v580 = vunpack.c.h.b16 %v395
        %v581 = vunpack.c.l.b16 %v396
        %v582 = vunpack.c.h.b16 %v396
        %v583 = vunpack.c.l.b16 %v397
        %v584 = vunpack.c.h.b16 %v397
        %v585 = vunpack.c.l.b16 %v398
        %v586 = vunpack.c.h.b16 %v398
        %v587 = vunpack.c.l.b16 %v399
        %v588 = vunpack.c.h.b16 %v399
        %v589 = vunpack.c.l.b16 %v400
        %v590 = vunpack.c.h.b16 %v400
        %v591 = vunpack.c.l.b16 %v401
        %v592 = vunpack.c.h.b16 %v401
        %v593 = vunpack.c.l.b16 %v402
        %v594 = vunpack.c.h.b16 %v402
        %v595 = vunpack.c.l.b16 %v403
        %v596 = vunpack.c.h.b16 %v403
        %v597 = vunpack.c.l.b16 %v404
        %v598 = vunpack.c.h.b16 %v404
        %v599 = vunpack.c.l.b16 %v405
        %v600 = vunpack.c.h.b16 %v405
        %v601 = vunpack.c.l.b16 %v406
        %v602 = vunpack.c.h.b16 %v406
        %v603 = vunpack.c.l.b16 %v407
        %v604 = vunpack.c.h.b16 %v407
        %v605 = vunpack.c.l.b16 %v408
        %v606 = vunpack.c.h.b16 %v408
        %v607 = vunpack.c.l.b16 %v409
        %v608 = vunpack.c.h.b16 %v409
        %v609 = vunpack.c.l.b16 %v410
        %v610 = vunpack.c.h.b16 %v410
        %v611 = vunpack.c.l.b16 %v411
        %v612 = vunpack.c.h.b16 %v411
        %v613 = vunpack.c.l.b16 %v412
        %v614 = vunpack.c.h.b16 %v412
        %v615 = vunpack.c.l.b16 %v413
        %v616 = vunpack.c.h.b16 %v413
        %v617 = vunpack.c.l.b16 %v414
        %v618 = vunpack.c.h.b16 %v414
        %v619 = vunpack.c.l.b16 %v415
        %v620 = vunpack.c.h.b16 %v415
        %v621 = vunpack.c.l.b16 %v416
        %v622 = vunpack.c.h.b16 %v416
        %v623 = vunpack.c.l.b16 %v417
        %v624 = vunpack.c.h.b16 %v417
        %v625 = vunpack.c.l.b16 %v418
        %v626 = vunpack.c.h.b16 %v418
        %v627 = vpack.c.b16 %v503, %v499
        %v628 = vpack.c.b16 %v504, %v500
        %v629 = vpack.c.b16 %v505, %v501
        %v630 = vpack.c.b16 %v506, %v502
        %v631 = vpack.c.b16 %v511, %v507
        %v632 = vpack.c.b16 %v512, %v508
        %v633 = vpack.c.b16 %v513, %v509
        %v634 = vpack.c.b16 %v514, %v510
        %v635 = vpack.c.b16 %v519, %v515
        %v636 = vpack.c.b16 %v520, %v516
        %v637 = vpack.c.b16 %v521, %v517
        %v638 = vpack.c.b16 %v522, %v518
        %v639 = vpack.c.b16 %v527, %v523
        %v640 = vpack.c.b16 %v528, %v524
        %v641 = vpack.c.b16 %v529, %v525
        %v642 = vpack.c.b16 %v530, %v526
        %v643 = vpack.c.b16 %v535, %v531
        %v644 = vpack.c.b16 %v536, %v532
        %v645 = vpack.c.b16 %v537, %v533
        %v646 = vpack.c.b16 %v538, %v534
        %v647 = vpack.c.b16 %v543, %v539
        %v648 = vpack.c.b16 %v544, %v540
        %v649 = vpack.c.b16 %v545, %v541
        %v650 = vpack.c.b16 %v546, %v542
        %v651 = vpack.c.b16 %v551, %v547
        %v652 = vpack.c.b16 %v552, %v548
        %v653 = vpack.c.b16 %v553, %v549
        %v654 = vpack.c.b16 %v554, %v550
        %v655 = vpack.c.b16 %v559, %v555
        %v656 = vpack.c.b16 %v560, %v556
        %v657 = vpack.c.b16 %v561, %v557
        %v658 = vpack.c.b16 %v562, %v558
        %v659 = vpack.c.b16 %v567, %v563
        %v660 = vpack.c.b16 %v568, %v564
        %v661 = vpack.c.b16 %v569, %v565
        %v662 = vpack.c.b16 %v570, %v566
        %v663 = vpack.c.b16 %v575, %v571
        %v664 = vpack.c.b16 %v576, %v572
        %v665 = vpack.c.b16 %v577, %v573
        %v666 = vpack.c.b16 %v578, %v574
        %v667 = vpack.c.b16 %v583, %v579
        %v668 = vpack.c.b16 %v584, %v580
        %v669 = vpack.c.b16 %v585, %v581
        %v670 = vpack.c.b16 %v586, %v582
        %v671 = vpack.c.b16 %v591, %v587
        %v672 = vpack.c.b16 %v592, %v588
        %v673 = vpack.c.b16 %v593, %v589
        %v674 = vpack.c.b16 %v594, %v590
        %v675 = vpack.c.b16 %v599, %v595
        %v676 = vpack.c.b16 %v600, %v596
        %v677 = vpack.c.b16 %v601, %v597
        %v678 = vpack.c.b16 %v602, %v598
        %v679 = vpack.c.b16 %v607, %v603
        %v680 = vpack.c.b16 %v608, %v604
        %v681 = vpack.c.b16 %v609, %v605
        %v682 = vpack.c.b16 %v610, %v606
        %v683 = vpack.c.b16 %v615, %v611
        %v684 = vpack.c.b16 %v616, %v612
        %v685 = vpack.c.b16 %v617, %v613
        %v686 = vpack.c.b16 %v618, %v614
        %v687 = vpack.c.b16 %v623, %v619
        %v688 = vpack.c.b16 %v624, %v620
        %v689 = vpack.c.b16 %v625, %v621
        %v690 = vpack.c.b16 %v626, %v622
        %755 = vmatpush.bf16.msra.mxu0 %v655
        %756 = vmatpush.bf16.msra.mxu0 %v651
        %757 = vmatpush.bf16.msra.mxu0 %v647
        %758 = vmatpush.bf16.msra.mxu0 %v643
        %759 = vmatpush.bf16.msra.mxu0 %v639
        %760 = vmatpush.bf16.msra.mxu0 %v635
        %761 = vmatpush.bf16.msra.mxu0 %v631
        %762 = vmatpush.bf16.msra.mxu0 %v627
        %763 = vmatmul.bf16.gmra.mxu0 %v431
        %v764 = vpop.f32.mrf.mxu0
        %v765 = vadd.f32 %v421, %v764
        %v766 = vpop.f32.mrf.mxu0
        %767 = vdwg.mxu0
        %768 = vmatpush.bf16.msra.mxu0 %v687
        %769 = vmatpush.bf16.msra.mxu0 %v683
        %770 = vmatpush.bf16.msra.mxu0 %v679
        %771 = vmatpush.bf16.msra.mxu0 %v675
        %772 = vmatpush.bf16.msra.mxu0 %v671
        %773 = vmatpush.bf16.msra.mxu0 %v667
        %774 = vmatpush.bf16.msra.mxu0 %v663
        %775 = vmatpush.bf16.msra.mxu0 %v659
        %776 = vmatmul.bf16.gmra.mxu0 %v432
        %v777 = vpop.f32.mrf.mxu0
        %v778 = vadd.f32 %v765, %v777
        %v779 = vpop.f32.mrf.mxu0
        %780 = vdwg.mxu0
        %781 = vmatpush.bf16.msra.mxu0 %v656
        %782 = vmatpush.bf16.msra.mxu0 %v652
        %783 = vmatpush.bf16.msra.mxu0 %v648
        %784 = vmatpush.bf16.msra.mxu0 %v644
        %785 = vmatpush.bf16.msra.mxu0 %v640
        %786 = vmatpush.bf16.msra.mxu0 %v636
        %787 = vmatpush.bf16.msra.mxu0 %v632
        %788 = vmatpush.bf16.msra.mxu0 %v628
        %789 = vmatmul.bf16.gmra.mxu0 %v431
        %v790 = vpop.f32.mrf.mxu0
        %v791 = vadd.f32 %v422, %v790
        %v792 = vpop.f32.mrf.mxu0
        %793 = vdwg.mxu0
        %794 = vmatpush.bf16.msra.mxu0 %v688
        %795 = vmatpush.bf16.msra.mxu0 %v684
        %796 = vmatpush.bf16.msra.mxu0 %v680
        %797 = vmatpush.bf16.msra.mxu0 %v676
        %798 = vmatpush.bf16.msra.mxu0 %v672
        %799 = vmatpush.bf16.msra.mxu0 %v668
        %800 = vmatpush.bf16.msra.mxu0 %v664
        %801 = vmatpush.bf16.msra.mxu0 %v660
        %802 = vmatmul.bf16.gmra.mxu0 %v432
        %v803 = vpop.f32.mrf.mxu0
        %v804 = vadd.f32 %v791, %v803
        %v805 = vpop.f32.mrf.mxu0
        %806 = vdwg.mxu0
        %807 = vmatpush.bf16.msra.mxu0 %v657
        %808 = vmatpush.bf16.msra.mxu0 %v653
        %809 = vmatpush.bf16.msra.mxu0 %v649
        %810 = vmatpush.bf16.msra.mxu0 %v645
        %811 = vmatpush.bf16.msra.mxu0 %v641
        %812 = vmatpush.bf16.msra.mxu0 %v637
        %813 = vmatpush.bf16.msra.mxu0 %v633
        %814 = vmatpush.bf16.msra.mxu0 %v629
        %815 = vmatmul.bf16.gmra.mxu0 %v431
        %v816 = vpop.f32.mrf.mxu0
        %v817 = vadd.f32 %v423, %v816
        %v818 = vpop.f32.mrf.mxu0
        %819 = vdwg.mxu0
        %820 = vmatpush.bf16.msra.mxu0 %v689
        %821 = vmatpush.bf16.msra.mxu0 %v685
        %822 = vmatpush.bf16.msra.mxu0 %v681
        %823 = vmatpush.bf16.msra.mxu0 %v677
        %824 = vmatpush.bf16.msra.mxu0 %v673
        %825 = vmatpush.bf16.msra.mxu0 %v669
        %826 = vmatpush.bf16.msra.mxu0 %v665
        %827 = vmatpush.bf16.msra.mxu0 %v661
        %828 = vmatmul.bf16.gmra.mxu0 %v432
        %v829 = vpop.f32.mrf.mxu0
        %v830 = vadd.f32 %v817, %v829
        %v831 = vpop.f32.mrf.mxu0
        %832 = vdwg.mxu0
        %833 = vmatpush.bf16.msra.mxu0 %v658
        %834 = vmatpush.bf16.msra.mxu0 %v654
        %835 = vmatpush.bf16.msra.mxu0 %v650
        %836 = vmatpush.bf16.msra.mxu0 %v646
        %837 = vmatpush.bf16.msra.mxu0 %v642
        %838 = vmatpush.bf16.msra.mxu0 %v638
        %839 = vmatpush.bf16.msra.mxu0 %v634
        %840 = vmatpush.bf16.msra.mxu0 %v630
        %841 = vmatmul.bf16.gmra.mxu0 %v431
        %v842 = vpop.f32.mrf.mxu0
        %v843 = vadd.f32 %v424, %v842
        %v844 = vpop.f32.mrf.mxu0
        %845 = vdwg.mxu0
        %846 = vmatpush.bf16.msra.mxu0 %v690
        %847 = vmatpush.bf16.msra.mxu0 %v686
        %848 = vmatpush.bf16.msra.mxu0 %v682
        %849 = vmatpush.bf16.msra.mxu0 %v678
        %850 = vmatpush.bf16.msra.mxu0 %v674
        %851 = vmatpush.bf16.msra.mxu0 %v670
        %852 = vmatpush.bf16.msra.mxu0 %v666
        %853 = vmatpush.bf16.msra.mxu0 %v662
        %854 = vmatmul.bf16.gmra.mxu0 %v432
        %v855 = vpop.f32.mrf.mxu0
        %v856 = vadd.f32 %v843, %v855
        %v857 = vpop.f32.mrf.mxu0
        %858 = vdwg.mxu0
        %v859 = vmul.f32 %v778, 0.5
        %v860 = vmul.f32 %v804, 0.5
        %v861 = vmul.f32 %v830, 0.5
        %v862 = vmul.f32 %v856, 0.5
        %v863 = vmul.f32 %v778, 0.70710677
        %v864 = vmul.f32 %v804, 0.70710677
        %v865 = vmul.f32 %v830, 0.70710677
        %v866 = vmul.f32 %v856, 0.70710677
        %v867 = vmul.f32 %v863, %v863
        %v868 = vmin.f32 16.0, %v867
        %v869 = vmul.f32 %v868, 2.1237322e-06
        %v870 = vadd.f32 %v869, 0.00028619796
        %v871 = vmul.f32 %v868, %v870
        %v872 = vadd.f32 %v871, 0.0036580483
        %v873 = vmul.f32 %v868, %v872
        %v874 = vadd.f32 %v873, 0.05243302
        %v875 = vmul.f32 %v868, %v874
        %v876 = vadd.f32 %v875, 0.18741608
        %v877 = vmul.f32 %v868, %v876
        %v878 = vadd.f32 %v877, 1.1283791
        %v879 = vmul.f32 %v863, %v878
        %v880 = vmul.f32 %v868, 3.8918573e-05
        %v881 = vadd.f32 %v880, 0.001143296
        %v882 = vmul.f32 %v868, %v881
        %v883 = vadd.f32 %v882, 0.014752088
        %v884 = vmul.f32 %v868, %v883
        %v885 = vadd.f32 %v884, 0.112945676
        %v886 = vmul.f32 %v868, %v885
        %v887 = vadd.f32 %v886, 0.4994258
        %v888 = vmul.f32 %v868, %v887
        %v889 = vadd.f32 %v888, 1.0
        %v890 = vrcp.pop %v889
        %v891 = vmul.f32 %v889, %v890
        %v892 = vsub.f32 1.0, %v891
        %v893 = vmul.f32 %v890, %v892
        %v894 = vadd.f32 %v890, %v893
        %vm895 = vweird.f32 %v889
        %vm896 = vweird.f32 %v890
        %vm897 = vmor %vm895, %vm896
        %v898 = vsel %vm897, %v890, %v894
        %v899 = vand.u32 2147483647, %v889
        %vm900 = vcmp.eq.f32.partialorder %v899, 8.507059e+37
        %v901 = vand.u32 %v889, 2147483648
        %v902 = vor.u32 1.1754944e-38, %v901
        %v903 = vsel %vm900, %v902, %v898
        %v904 = vmul.f32 %v879, %v903
        %v905 = vmin.f32 %v904, 1.0
        %v906 = vmax.f32 %v905, -1.0
        %v907 = vmul.f32 %v864, %v864
        %v908 = vmin.f32 16.0, %v907
        %v909 = vmul.f32 %v908, 2.1237322e-06
        %v910 = vadd.f32 %v909, 0.00028619796
        %v911 = vmul.f32 %v908, %v910
        %v912 = vadd.f32 %v911, 0.0036580483
        %v913 = vmul.f32 %v908, %v912
        %v914 = vadd.f32 %v913, 0.05243302
        %v915 = vmul.f32 %v908, %v914
        %v916 = vadd.f32 %v915, 0.18741608
        %v917 = vmul.f32 %v908, %v916
        %v918 = vadd.f32 %v917, 1.1283791
        %v919 = vmul.f32 %v864, %v918
        %v920 = vmul.f32 %v908, 3.8918573e-05
        %v921 = vadd.f32 %v920, 0.001143296
        %v922 = vmul.f32 %v908, %v921
        %v923 = vadd.f32 %v922, 0.014752088
        %v924 = vmul.f32 %v908, %v923
        %v925 = vadd.f32 %v924, 0.112945676
        %v926 = vmul.f32 %v908, %v925
        %v927 = vadd.f32 %v926, 0.4994258
        %v928 = vmul.f32 %v908, %v927
        %v929 = vadd.f32 %v928, 1.0
        %v930 = vrcp.pop %v929
        %v931 = vmul.f32 %v929, %v930
        %v932 = vsub.f32 1.0, %v931
        %v933 = vmul.f32 %v930, %v932
        %v934 = vadd.f32 %v930, %v933
        %vm935 = vweird.f32 %v929
        %vm936 = vweird.f32 %v930
        %vm937 = vmor %vm935, %vm936
        %v938 = vsel %vm937, %v930, %v934
        %v939 = vand.u32 2147483647, %v929
        %vm940 = vcmp.eq.f32.partialorder %v939, 8.507059e+37
        %v941 = vand.u32 %v929, 2147483648
        %v942 = vor.u32 1.1754944e-38, %v941
        %v943 = vsel %vm940, %v942, %v938
        %v944 = vmul.f32 %v919, %v943
        %v945 = vmin.f32 %v944, 1.0
        %v946 = vmax.f32 %v945, -1.0
        %v947 = vmul.f32 %v865, %v865
        %v948 = vmin.f32 16.0, %v947
        %v949 = vmul.f32 %v948, 2.1237322e-06
        %v950 = vadd.f32 %v949, 0.00028619796
        %v951 = vmul.f32 %v948, %v950
        %v952 = vadd.f32 %v951, 0.0036580483
        %v953 = vmul.f32 %v948, %v952
        %v954 = vadd.f32 %v953, 0.05243302
        %v955 = vmul.f32 %v948, %v954
        %v956 = vadd.f32 %v955, 0.18741608
        %v957 = vmul.f32 %v948, %v956
        %v958 = vadd.f32 %v957, 1.1283791
        %v959 = vmul.f32 %v865, %v958
        %v960 = vmul.f32 %v948, 3.8918573e-05
        %v961 = vadd.f32 %v960, 0.001143296
        %v962 = vmul.f32 %v948, %v961
        %v963 = vadd.f32 %v962, 0.014752088
        %v964 = vmul.f32 %v948, %v963
        %v965 = vadd.f32 %v964, 0.112945676
        %v966 = vmul.f32 %v948, %v965
        %v967 = vadd.f32 %v966, 0.4994258
        %v968 = vmul.f32 %v948, %v967
        %v969 = vadd.f32 %v968, 1.0
        %v970 = vrcp.pop %v969
        %v971 = vmul.f32 %v969, %v970
        %v972 = vsub.f32 1.0, %v971
        %v973 = vmul.f32 %v970, %v972
        %v974 = vadd.f32 %v970, %v973
        %vm975 = vweird.f32 %v969
        %vm976 = vweird.f32 %v970
        %vm977 = vmor %vm975, %vm976
        %v978 = vsel %vm977, %v970, %v974
        %v979 = vand.u32 2147483647, %v969
        %vm980 = vcmp.eq.f32.partialorder %v979, 8.507059e+37
        %v981 = vand.u32 %v969, 2147483648
        %v982 = vor.u32 1.1754944e-38, %v981
        %v983 = vsel %vm980, %v982, %v978
        %v984 = vmul.f32 %v959, %v983
        %v985 = vmin.f32 %v984, 1.0
        %v986 = vmax.f32 %v985, -1.0
        %v987 = vmul.f32 %v866, %v866
        %v988 = vmin.f32 16.0, %v987
        %v989 = vmul.f32 %v988, 2.1237322e-06
        %v990 = vadd.f32 %v989, 0.00028619796
        %v991 = vmul.f32 %v988, %v990
        %v992 = vadd.f32 %v991, 0.0036580483
        %v993 = vmul.f32 %v988, %v992
        %v994 = vadd.f32 %v993, 0.05243302
        %v995 = vmul.f32 %v988, %v994
        %v996 = vadd.f32 %v995, 0.18741608
        %v997 = vmul.f32 %v988, %v996
        %v998 = vadd.f32 %v997, 1.1283791
        %v999 = vmul.f32 %v866, %v998
        %v1000 = vmul.f32 %v988, 3.8918573e-05
        %v1001 = vadd.f32 %v1000, 0.001143296
        %v1002 = vmul.f32 %v988, %v1001
        %v1003 = vadd.f32 %v1002, 0.014752088
        %v1004 = vmul.f32 %v988, %v1003
        %v1005 = vadd.f32 %v1004, 0.112945676
        %v1006 = vmul.f32 %v988, %v1005
        %v1007 = vadd.f32 %v1006, 0.4994258
        %v1008 = vmul.f32 %v988, %v1007
        %v1009 = vadd.f32 %v1008, 1.0
        %v1010 = vrcp.pop %v1009
        %v1011 = vmul.f32 %v1009, %v1010
        %v1012 = vsub.f32 1.0, %v1011
        %v1013 = vmul.f32 %v1010, %v1012
        %v1014 = vadd.f32 %v1010, %v1013
        %vm1015 = vweird.f32 %v1009
        %vm1016 = vweird.f32 %v1010
        %vm1017 = vmor %vm1015, %vm1016
        %v1018 = vsel %vm1017, %v1010, %v1014
        %v1019 = vand.u32 2147483647, %v1009
        %vm1020 = vcmp.eq.f32.partialorder %v1019, 8.507059e+37
        %v1021 = vand.u32 %v1009, 2147483648
        %v1022 = vor.u32 1.1754944e-38, %v1021
        %v1023 = vsel %vm1020, %v1022, %v1018
        %v1024 = vmul.f32 %v999, %v1023
        %v1025 = vmin.f32 %v1024, 1.0
        %v1026 = vmax.f32 %v1025, -1.0
        %v1027 = vadd.f32 %v906, 1.0
        %v1028 = vadd.f32 %v946, 1.0
        %v1029 = vadd.f32 %v986, 1.0
        %v1030 = vadd.f32 %v1026, 1.0
        %v1031 = vmul.f32 %v859, %v1027
        %v1032 = vmul.f32 %v860, %v1028
        %v1033 = vmul.f32 %v861, %v1029
        %v1034 = vmul.f32 %v862, %v1030
        %v1035 = vld [vmem:[#allocation2] sm:$0x3]
        %v1036 = vpack.c.bf16 %v1031, %v1031
        %v1037 = vpack.c.bf16 %v1032, %v1032
        %v1038 = vpack.c.bf16 %v1033, %v1033
        %v1039 = vpack.c.bf16 %v1034, %v1034
        %v1040 = vld [vmem:[%s306] sm:$0xf]
        %v1041 = vld [vmem:[%s306 + $0x4] sm:$0xf]
        %v1042 = vld [vmem:[%s306 + $0x8] sm:$0xf]
        %v1043 = vld [vmem:[%s306 + $0xc] sm:$0xf]
        %v1044 = vld [vmem:[%s306 + $0x10] sm:$0xf]
        %v1045 = vld [vmem:[%s306 + $0x14] sm:$0xf]
        %v1046 = vld [vmem:[%s306 + $0x18] sm:$0xf]
        %v1047 = vld [vmem:[%s306 + $0x1c] sm:$0xf]
        %v1048 = vld [vmem:[%s306 + $0x20] sm:$0xf]
        %v1049 = vld [vmem:[%s306 + $0x24] sm:$0xf]
        %v1050 = vld [vmem:[%s306 + $0x28] sm:$0xf]
        %v1051 = vld [vmem:[%s306 + $0x2c] sm:$0xf]
        %v1052 = vld [vmem:[%s306 + $0x30] sm:$0xf]
        %v1053 = vld [vmem:[%s306 + $0x34] sm:$0xf]
        %v1054 = vld [vmem:[%s306 + $0x38] sm:$0xf]
        %v1055 = vld [vmem:[%s306 + $0x3c] sm:$0xf]
        %v1056 = vld [vmem:[%s306 + $0x40] sm:$0xf]
        %v1057 = vld [vmem:[%s306 + $0x44] sm:$0xf]
        %v1058 = vld [vmem:[%s306 + $0x48] sm:$0xf]
        %v1059 = vld [vmem:[%s306 + $0x4c] sm:$0xf]
        %v1060 = vld [vmem:[%s306 + $0x50] sm:$0xf]
        %v1061 = vld [vmem:[%s306 + $0x54] sm:$0xf]
        %v1062 = vld [vmem:[%s306 + $0x58] sm:$0xf]
        %v1063 = vld [vmem:[%s306 + $0x5c] sm:$0xf]
        %v1064 = vld [vmem:[%s306 + $0x60] sm:$0xf]
        %v1065 = vld [vmem:[%s306 + $0x64] sm:$0xf]
        %v1066 = vld [vmem:[%s306 + $0x68] sm:$0xf]
        %v1067 = vld [vmem:[%s306 + $0x6c] sm:$0xf]
        %v1068 = vld [vmem:[%s306 + $0x70] sm:$0xf]
        %v1069 = vld [vmem:[%s306 + $0x74] sm:$0xf]
        %v1070 = vld [vmem:[%s306 + $0x78] sm:$0xf]
        %v1071 = vld [vmem:[%s306 + $0x7c] sm:$0xf]
        %v1072 = vld [vmem:[%s306 + $0x80] sm:$0xf]
        %v1073 = vld [vmem:[%s306 + $0x84] sm:$0xf]
        %v1074 = vld [vmem:[%s306 + $0x88] sm:$0xf]
        %v1075 = vld [vmem:[%s306 + $0x8c] sm:$0xf]
        %v1076 = vld [vmem:[%s306 + $0x90] sm:$0xf]
        %v1077 = vld [vmem:[%s306 + $0x94] sm:$0xf]
        %v1078 = vld [vmem:[%s306 + $0x98] sm:$0xf]
        %v1079 = vld [vmem:[%s306 + $0x9c] sm:$0xf]
        %v1080 = vld [vmem:[%s306 + $0xa0] sm:$0xf]
        %v1081 = vld [vmem:[%s306 + $0xa4] sm:$0xf]
        %v1082 = vld [vmem:[%s306 + $0xa8] sm:$0xf]
        %v1083 = vld [vmem:[%s306 + $0xac] sm:$0xf]
        %v1084 = vld [vmem:[%s306 + $0xb0] sm:$0xf]
        %v1085 = vld [vmem:[%s306 + $0xb4] sm:$0xf]
        %v1086 = vld [vmem:[%s306 + $0xb8] sm:$0xf]
        %v1087 = vld [vmem:[%s306 + $0xbc] sm:$0xf]
        %v1088 = vld [vmem:[%s306 + $0xc0] sm:$0xf]
        %v1089 = vld [vmem:[%s306 + $0xc4] sm:$0xf]
        %v1090 = vld [vmem:[%s306 + $0xc8] sm:$0xf]
        %v1091 = vld [vmem:[%s306 + $0xcc] sm:$0xf]
        %v1092 = vld [vmem:[%s306 + $0xd0] sm:$0xf]
        %v1093 = vld [vmem:[%s306 + $0xd4] sm:$0xf]
        %v1094 = vld [vmem:[%s306 + $0xd8] sm:$0xf]
        %v1095 = vld [vmem:[%s306 + $0xdc] sm:$0xf]
        %v1096 = vld [vmem:[%s306 + $0xe0] sm:$0xf]
        %v1097 = vld [vmem:[%s306 + $0xe4] sm:$0xf]
        %v1098 = vld [vmem:[%s306 + $0xe8] sm:$0xf]
        %v1099 = vld [vmem:[%s306 + $0xec] sm:$0xf]
        %v1100 = vld [vmem:[%s306 + $0xf0] sm:$0xf]
        %v1101 = vld [vmem:[%s306 + $0xf4] sm:$0xf]
        %v1102 = vld [vmem:[%s306 + $0xf8] sm:$0xf]
        %v1103 = vld [vmem:[%s306 + $0xfc] sm:$0xf]
        %v1168 = vunpack.c.l.b16 %v1040
        %v1169 = vunpack.c.l.b16 %v1041
        %v1170 = vunpack.c.l.b16 %v1042
        %v1171 = vunpack.c.l.b16 %v1043
        %v1172 = vunpack.c.l.b16 %v1044
        %v1173 = vunpack.c.l.b16 %v1045
        %v1174 = vunpack.c.l.b16 %v1046
        %v1175 = vunpack.c.l.b16 %v1047
        %v1176 = vunpack.c.l.b16 %v1048
        %v1177 = vunpack.c.l.b16 %v1049
        %v1178 = vunpack.c.l.b16 %v1050
        %v1179 = vunpack.c.l.b16 %v1051
        %v1180 = vunpack.c.l.b16 %v1052
        %v1181 = vunpack.c.l.b16 %v1053
        %v1182 = vunpack.c.l.b16 %v1054
        %v1183 = vunpack.c.l.b16 %v1055
        %v1184 = vunpack.c.l.b16 %v1056
        %v1185 = vunpack.c.l.b16 %v1057
        %v1186 = vunpack.c.l.b16 %v1058
        %v1187 = vunpack.c.l.b16 %v1059
        %v1188 = vunpack.c.l.b16 %v1060
        %v1189 = vunpack.c.l.b16 %v1061
        %v1190 = vunpack.c.l.b16 %v1062
        %v1191 = vunpack.c.l.b16 %v1063
        %v1192 = vunpack.c.l.b16 %v1064
        %v1193 = vunpack.c.l.b16 %v1065
        %v1194 = vunpack.c.l.b16 %v1066
        %v1195 = vunpack.c.l.b16 %v1067
        %v1196 = vunpack.c.l.b16 %v1068
        %v1197 = vunpack.c.l.b16 %v1069
        %v1198 = vunpack.c.l.b16 %v1070
        %v1199 = vunpack.c.l.b16 %v1071
        %v1200 = vunpack.c.l.b16 %v1072
        %v1201 = vunpack.c.l.b16 %v1073
        %v1202 = vunpack.c.l.b16 %v1074
        %v1203 = vunpack.c.l.b16 %v1075
        %v1204 = vunpack.c.l.b16 %v1076
        %v1205 = vunpack.c.l.b16 %v1077
        %v1206 = vunpack.c.l.b16 %v1078
        %v1207 = vunpack.c.l.b16 %v1079
        %v1208 = vunpack.c.l.b16 %v1080
        %v1209 = vunpack.c.l.b16 %v1081
        %v1210 = vunpack.c.l.b16 %v1082
        %v1211 = vunpack.c.l.b16 %v1083
        %v1212 = vunpack.c.l.b16 %v1084
        %v1213 = vunpack.c.l.b16 %v1085
        %v1214 = vunpack.c.l.b16 %v1086
        %v1215 = vunpack.c.l.b16 %v1087
        %v1216 = vunpack.c.l.b16 %v1088
        %v1217 = vunpack.c.l.b16 %v1089
        %v1218 = vunpack.c.l.b16 %v1090
        %v1219 = vunpack.c.l.b16 %v1091
        %v1220 = vunpack.c.l.b16 %v1092
        %v1221 = vunpack.c.l.b16 %v1093
        %v1222 = vunpack.c.l.b16 %v1094
        %v1223 = vunpack.c.l.b16 %v1095
        %v1224 = vunpack.c.l.b16 %v1096
        %v1225 = vunpack.c.l.b16 %v1097
        %v1226 = vunpack.c.l.b16 %v1098
        %v1227 = vunpack.c.l.b16 %v1099
        %v1228 = vunpack.c.l.b16 %v1100
        %v1229 = vunpack.c.l.b16 %v1101
        %v1230 = vunpack.c.l.b16 %v1102
        %v1231 = vunpack.c.l.b16 %v1103
        %v1232 = vpack.c.b16 %v1169, %v1168
        %v1233 = vpack.c.b16 %v1171, %v1170
        %v1234 = vpack.c.b16 %v1173, %v1172
        %v1235 = vpack.c.b16 %v1175, %v1174
        %v1236 = vpack.c.b16 %v1177, %v1176
        %v1237 = vpack.c.b16 %v1179, %v1178
        %v1238 = vpack.c.b16 %v1181, %v1180
        %v1239 = vpack.c.b16 %v1183, %v1182
        %v1240 = vpack.c.b16 %v1185, %v1184
        %v1241 = vpack.c.b16 %v1187, %v1186
        %v1242 = vpack.c.b16 %v1189, %v1188
        %v1243 = vpack.c.b16 %v1191, %v1190
        %v1244 = vpack.c.b16 %v1193, %v1192
        %v1245 = vpack.c.b16 %v1195, %v1194
        %v1246 = vpack.c.b16 %v1197, %v1196
        %v1247 = vpack.c.b16 %v1199, %v1198
        %v1248 = vpack.c.b16 %v1201, %v1200
        %v1249 = vpack.c.b16 %v1203, %v1202
        %v1250 = vpack.c.b16 %v1205, %v1204
        %v1251 = vpack.c.b16 %v1207, %v1206
        %v1252 = vpack.c.b16 %v1209, %v1208
        %v1253 = vpack.c.b16 %v1211, %v1210
        %v1254 = vpack.c.b16 %v1213, %v1212
        %v1255 = vpack.c.b16 %v1215, %v1214
        %v1256 = vpack.c.b16 %v1217, %v1216
        %v1257 = vpack.c.b16 %v1219, %v1218
        %v1258 = vpack.c.b16 %v1221, %v1220
        %v1259 = vpack.c.b16 %v1223, %v1222
        %v1260 = vpack.c.b16 %v1225, %v1224
        %v1261 = vpack.c.b16 %v1227, %v1226
        %v1262 = vpack.c.b16 %v1229, %v1228
        %v1263 = vpack.c.b16 %v1231, %v1230
        %1296 = vmatpush.bf16.msra.mxu0 %v1239
        %1297 = vmatpush.bf16.msra.mxu0 %v1238
        %1298 = vmatpush.bf16.msra.mxu0 %v1237
        %1299 = vmatpush.bf16.msra.mxu0 %v1236
        %1300 = vmatpush.bf16.msra.mxu0 %v1235
        %1301 = vmatpush.bf16.msra.mxu0 %v1234
        %1302 = vmatpush.bf16.msra.mxu0 %v1233
        %1303 = vmatpush.bf16.msra.mxu0 %v1232
        %1304 = vmatmul.bf16.gmra.mxu0 %v1036
        %v1305 = vpop.f32.mrf.mxu0
        %v1306 = vadd.f32 0.0, %v1305
        %v1307 = vpop.f32.mrf.mxu0
        %1308 = vdwg.mxu0
        %1309 = vmatpush.bf16.msra.mxu0 %v1247
        %1310 = vmatpush.bf16.msra.mxu0 %v1246
        %1311 = vmatpush.bf16.msra.mxu0 %v1245
        %1312 = vmatpush.bf16.msra.mxu0 %v1244
        %1313 = vmatpush.bf16.msra.mxu0 %v1243
        %1314 = vmatpush.bf16.msra.mxu0 %v1242
        %1315 = vmatpush.bf16.msra.mxu0 %v1241
        %1316 = vmatpush.bf16.msra.mxu0 %v1240
        %1317 = vmatmul.bf16.gmra.mxu0 %v1037
        %v1318 = vpop.f32.mrf.mxu0
        %v1319 = vadd.f32 %v1306, %v1318
        %v1320 = vpop.f32.mrf.mxu0
        %1321 = vdwg.mxu0
        %1322 = vmatpush.bf16.msra.mxu0 %v1255
        %1323 = vmatpush.bf16.msra.mxu0 %v1254
        %1324 = vmatpush.bf16.msra.mxu0 %v1253
        %1325 = vmatpush.bf16.msra.mxu0 %v1252
        %1326 = vmatpush.bf16.msra.mxu0 %v1251
        %1327 = vmatpush.bf16.msra.mxu0 %v1250
        %1328 = vmatpush.bf16.msra.mxu0 %v1249
        %1329 = vmatpush.bf16.msra.mxu0 %v1248
        %1330 = vmatmul.bf16.gmra.mxu0 %v1038
        %v1331 = vpop.f32.mrf.mxu0
        %v1332 = vadd.f32 %v1319, %v1331
        %v1333 = vpop.f32.mrf.mxu0
        %1334 = vdwg.mxu0
        %1335 = vmatpush.bf16.msra.mxu0 %v1263
        %1336 = vmatpush.bf16.msra.mxu0 %v1262
        %1337 = vmatpush.bf16.msra.mxu0 %v1261
        %1338 = vmatpush.bf16.msra.mxu0 %v1260
        %1339 = vmatpush.bf16.msra.mxu0 %v1259
        %1340 = vmatpush.bf16.msra.mxu0 %v1258
        %1341 = vmatpush.bf16.msra.mxu0 %v1257
        %1342 = vmatpush.bf16.msra.mxu0 %v1256
        %1343 = vmatmul.bf16.gmra.mxu0 %v1039
        %v1344 = vpop.f32.mrf.mxu0
        %v1345 = vadd.f32 %v1332, %v1344
        %v1346 = vpop.f32.mrf.mxu0
        %1347 = vdwg.mxu0
        %v1348 = vadd.f32 %v1035, %v1345
        %1349 = vst [vmem:[#allocation2] sm:$0x3] %v1348
        %p1350 = scmp.eq.s32.totalorder %s24, 1
        // Predicated region
        $region61: #{sytlenet_forward.2} parent=47 // pred_check
          %p1351 = pneg %p1350
        $region62: #{sytlenet_forward.2} parent=47 // pred_check_branch
          %1353 = sbr.rel (%p1351) target = $region64
        $region63: #{sytlenet_forward.2} parent=47 // pred_region
          %v1354 = vld [vmem:[#allocation2] sm:$0x3]
          %v1355 = vld [vmem:[%s4] sm:$0x1]
          %v1357 = vperm.slane %v1355, 0
          %v1359 = vadd.f32 %v1354, %v1357
          %vm1360 = vcmask 1041408
          %v1361 = vsel %vm1360, %v1359, 0.0
          %1362 = vadd.xlane.f32.xlu0 %v1361
          %v1363 = vpop.xlane.xlu0 %1362
          %v1364 = vrcp.pop 128.0
          %v1365 = vmul.f32 128.0, %v1364
          %v1366 = vsub.f32 1.0, %v1365
          %v1367 = vmul.f32 %v1364, %v1366
          %v1368 = vadd.f32 %v1364, %v1367
          %vm1369 = vweird.f32 %v1364
          %v1370 = vsel %vm1369, %v1364, %v1368
          %v1371 = vmul.f32 %v1363, %v1370
          %v1372 = vsub.f32 %v1359, %v1371
          %v1373 = vmul.f32 %v1372, %v1372
          %v1374 = vsel %vm1360, %v1373, 0.0
          %1375 = vadd.xlane.f32.xlu0 %v1374
          %v1376 = vpop.xlane.xlu0 %1375
          %v1377 = vmul.f32 %v1376, %v1370
          %v1378 = vadd.f32 %v1377, 1e-05
          %v1379 = vrsqrt.pop %v1378
          %v1380 = vmul.f32 %v1379, %v1378
          %v1381 = vmul.f32 %v1380, %v1379
          %v1382 = vmul.f32 0.5, %v1381
          %v1383 = vsub.f32 1.5, %v1382
          %v1384 = vmul.f32 %v1379, %v1383
          %vm1385 = vweird.f32 %v1378
          %vm1386 = vweird.f32 %v1379
          %vm1387 = vmor %vm1385, %vm1386
          %v1388 = vsel %vm1387, %v1379, %v1384
          %v1389 = vmul.f32 %v1372, %v1388
          %v1390 = vld [vmem:[%s5] sm:$0x1]
          %v1392 = vperm.slane %v1390, 0
          %v1394 = vmul.f32 %v1389, %v1392
          %v1395 = vld [vmem:[%s6] sm:$0x1]
          %v1397 = vperm.slane %v1395, 0
          %v1399 = vadd.f32 %v1394, %v1397
          %1400 = vst [vmem:[%s7] sm:$0x3] %v1399
        $region64: #{sytlenet_forward.2} parent=47 // pred_fallthru
          _
        // Predicated region
        $region65: #{sytlenet_forward.2} parent=47 // pred_check
          %p1401 = pneg %p199
        $region66: #{sytlenet_forward.2} parent=47 // pred_check_branch
          %1403 = sbr.rel (%p1401) target = $region68
        $region67: #{sytlenet_forward.2} parent=47 // pred_region
          _
        $region68: #{sytlenet_forward.2} parent=47 // pred_fallthru
          _
        // Predicated region
        $region69: #{sytlenet_forward.2} parent=47 // pred_check
          %p1404 = pneg %p199
        $region70: #{sytlenet_forward.2} parent=47 // pred_check_branch
          %1406 = sbr.rel (%p1404) target = $region72
        $region71: #{sytlenet_forward.2} parent=47 // pred_region
          _
        $region72: #{sytlenet_forward.2} parent=47 // pred_fallthru
          _
      $region48: #{sytlenet_forward.2} parent=5 // pred_fallthru
        _
      %p1407 = scmp.le.s32.totalorder 2, %s19
      // Predicated region
      $region73: #{sytlenet_forward.2} parent=5 // pred_check
        %p1408 = pneg %p1407
      $region74: #{sytlenet_forward.2} parent=5 // pred_check_branch
        %1410 = sbr.rel (%p1408) target = $region76
      $region75: #{sytlenet_forward.2} parent=5 // pred_region
        %s1411 = ssub.s32 %s19, 2
      $region76: #{sytlenet_forward.2} parent=5 // pred_fallthru
        _
    $region6: #{sytlenet_forward.2} parent=1 // loop_footer
      %s23 = sadd.s32 1, %s19
    $region7: #{sytlenet_forward.2} parent=1 // loop_footer_branch
      %18 = sbr.rel target = $region3
    $region8: #{sytlenet_forward.2} parent=1 // loop_exit
      _
    %1412 = vsyncpa [#allocation4], 1
    %s1413 = scalar_lea.sflag [#allocation4], 1
    %1414 = vsyncpa %s1413, 1
    %1415 = vsyncpa [#allocation6], 1
    %s1416 = scalar_lea.sflag [#allocation6], 1
    %1417 = vsyncpa %s1416, 1

</llo_original>
